<compile_context>
chip_gen: v6e
topology: v6e:2x2x1
jax: 0.10.0
libtpu: 0.0.40
codegen_flags: <defaults>
</compile_context>

<pallas_src>
import jax
import jax.numpy as jnp
from jax import lax
from jax.experimental import pallas as pl
from jax.experimental.pallas import tpu as pltpu


def _mm_lstm_kernel(xproj_ref, tproj_ref, h0_ref, c0_ref, tlen_ref,
                    whh_v_ref, whh_t_ref,
                    wfc_v_ref, wfc_t_ref, bfc_ref,
                    out_ref, hid_ref):
    B, H = h0_ref.shape
    T = xproj_ref.shape[0]
    S = tproj_ref.shape[0]
    G = 4 * H

    # Loop invariants: loaded once, live across all unrolled steps.
    whh_v = whh_v_ref[...]
    whh_t = whh_t_ref[...]
    tlen = tlen_ref[...]                                   # (B, 1) int32

    # PyTorch gate order along lanes: [i | f | g | o]; g -> tanh, rest -> sigmoid.
    lane = lax.broadcasted_iota(jnp.int32, (B, G), 1)
    g_mask = (lane >= 2 * H) & (lane < 3 * H)

    def recur(pre, h, c, whh):
        # `pre` already contains x_t @ W_ih^T + (b_ih + b_hh); only the
        # recurrent matmul sits on the loop-carried dependency chain.
        gates = pre + jnp.dot(h, whh, preferred_element_type=jnp.float32)
        # Two full-vreg EUP ops + one VPU select (instead of 4 sliced EUP pushes).
        act = jnp.where(g_mask, jnp.tanh(gates), jax.nn.sigmoid(gates))
        i = act[:, 0 * H:1 * H]
        f = act[:, 1 * H:2 * H]
        g = act[:, 2 * H:3 * H]
        o = act[:, 3 * H:4 * H]
        c_new = f * c + i * g
        h_new = o * jnp.tanh(c_new)
        return h_new, c_new

    h_v, c_v = h0_ref[...], c0_ref[...]
    zeros = jnp.zeros((B, H), jnp.float32)
    h_t, c_t, out_fwd = zeros, zeros, zeros

    # Fully-unrolled, INTERLEAVED recurrences: video + text chains are
    # independent until the fc, so interleaving doubles the available ILP.
    for t in range(max(T, S)):
        if t < T:
            h_v, c_v = recur(xproj_ref[t], h_v, c_v, whh_v)
        if t < S:
            h_t, c_t = recur(tproj_ref[t], h_t, c_t, whh_t)
            # pack_padded/pad_packed readout == hidden at step text_len-1.
            out_fwd = jnp.where(tlen == (t + 1), h_t, out_fwd)

    # dropout: identity in eval mode.
    # fc over concat(h_v, out_fwd): concat folded into two matmuls; columns
    # pre-padded to 128 so the store is a full-lane vst.
    logits = (jnp.dot(h_v, wfc_v_ref[...], preferred_element_type=jnp.float32)
              + jnp.dot(out_fwd, wfc_t_ref[...], preferred_element_type=jnp.float32)
              + bfc_ref[...])
    out_ref[...] = logits
    hid_ref[...] = h_v


def multimodal_lstm_forward(params, x, hidden, text, text_len):
    """x: (B,T,E) f32; hidden: ((1,B,H),(1,B,H)); text: (B,S) int32; text_len: (B,) int32."""
    h0 = hidden[0][0]
    c0 = hidden[1][0]
    B, T, E = x.shape
    S = text.shape[1]
    H = h0.shape[1]

    # --- wrapper glue (throughput work, XLA-fused): embedding gather and both
    #     input projections + fused biases, hoisted off the recurrent chain. ---
    b_v = params["b_ih_v"] + params["b_hh_v"]                         # (4H,)
    b_t = params["b_ih_t"] + params["b_hh_t"]                         # (4H,)
    xproj = jnp.einsum("bte,ge->btg", x, params["w_ih_v"]) + b_v      # (B,T,4H)
    text_emb = jnp.take(params["emb"], text, axis=0)                  # (B,S,300)
    tproj = jnp.einsum("bse,ge->bsg", text_emb, params["w_ih_t"]) + b_t
    xproj = jnp.transpose(xproj, (1, 0, 2))                           # (T,B,4H)
    tproj = jnp.transpose(tproj, (1, 0, 2))                           # (S,B,4H)

    whh_v = params["w_hh_v"].T                                        # (H,4H)
    whh_t = params["w_hh_t"].T                                        # (H,4H)

    wfc = params["w_fc"].T                                            # (2H,OUT)
    OUT = wfc.shape[1]
    OUT_PAD = max(128, ((OUT + 127) // 128) * 128)                    # lane-dense
    pad = OUT_PAD - OUT
    wfc_v = jnp.pad(wfc[:H], ((0, 0), (0, pad)))                      # (H,OUT_PAD)
    wfc_t = jnp.pad(wfc[H:], ((0, 0), (0, pad)))                      # (H,OUT_PAD)
    bfc = jnp.pad(params["b_fc"], (0, pad)).reshape(1, OUT_PAD)

    tlen = text_len.astype(jnp.int32).reshape(B, 1)

    inputs = [xproj, tproj, h0, c0, tlen,
              whh_v, whh_t, wfc_v, wfc_t, bfc]

    def full_spec(a):
        nd = a.ndim
        return pl.BlockSpec(a.shape, lambda i, _nd=nd: (0,) * _nd)

    out_shapes = (jax.ShapeDtypeStruct((B, OUT_PAD), jnp.float32),
                  jax.ShapeDtypeStruct((B, H), jnp.float32))
    out_specs = (pl.BlockSpec((B, OUT_PAD), lambda i: (0, 0)),
                 pl.BlockSpec((B, H), lambda i: (0, 0)))

    out_pad, hid = pl.pallas_call(
        _mm_lstm_kernel,
        grid=(1,),
        in_specs=[full_spec(a) for a in inputs],
        out_specs=out_specs,
        out_shape=out_shapes,
        compiler_params=pltpu.CompilerParams(dimension_semantics=("arbitrary",)),
    )(*inputs)
    # TODO(synk): for production batch sizes, add a batch grid axis tiled to the
    # MXU row count with dimension_semantics=("parallel",) to use both v7x TCs.
    return out_pad[:, :OUT], hid


if __name__ == "__main__":
    # Small shapes consistent with the module.
    B, T, E, S, H, OUT = 2, 8, 32, 6, 32, 3
    VOCAB = 50          # len(text_fielder.vocab); embedding table has VOCAB + 2 rows
    TXT_EMB = 300       # nn.Embedding(..., 300)

    key = jax.random.PRNGKey(0)
    ks = jax.random.split(key, 16)
    lstm_b = 1.0 / float(H) ** 0.5
    fc_b = 1.0 / float(2 * H) ** 0.5
    u = lambda k, shape, b: jax.random.uniform(k, shape, jnp.float32, -b, b)

    params = {
        "emb":    jax.random.normal(ks[0], (VOCAB + 2, TXT_EMB), jnp.float32),
        "w_ih_v": u(ks[1], (4 * H, E), lstm_b),
        "w_hh_v": u(ks[2], (4 * H, H), lstm_b),
        "b_ih_v": u(ks[3], (4 * H,), lstm_b),
        "b_hh_v": u(ks[4], (4 * H,), lstm_b),
        "w_ih_t": u(ks[5], (4 * H, TXT_EMB), lstm_b),
        "w_hh_t": u(ks[6], (4 * H, H), lstm_b),
        "b_ih_t": u(ks[7], (4 * H,), lstm_b),
        "b_hh_t": u(ks[8], (4 * H,), lstm_b),
        "w_fc":   u(ks[9], (OUT, 2 * H), fc_b),
        "b_fc":   u(ks[10], (OUT,), fc_b),
    }

    x = jax.random.normal(ks[11], (B, T, E), jnp.float32)
    # init_hidden uses torch.rand -> uniform [0, 1)
    h0 = jax.random.uniform(ks[12], (1, B, H), jnp.float32)
    c0 = jax.random.uniform(ks[13], (1, B, H), jnp.float32)
    text = jax.random.randint(ks[14], (B, S), 0, VOCAB + 2).astype(jnp.int32)
    text_len = jnp.array([S, S - 2], jnp.int32)

    fwd = jax.jit(multimodal_lstm_forward)
    out, hid = fwd(params, x, (h0, c0), text, text_len)
    jax.block_until_ready((out, hid))
    assert out.shape == (B, OUT) and hid.shape == (B, H)
    print("KERNEL_OK")
</pallas_src>

<mosaic_0001>
module attributes {stable_mosaic.version = 11 : i64} {
  func.func @_mm_lstm_kernel(%arg0: i32, %arg1: memref<8x2x128xf32, #tpu.memory_space<vmem>>, %arg2: memref<6x2x128xf32, #tpu.memory_space<vmem>>, %arg3: memref<2x32xf32, #tpu.memory_space<vmem>>, %arg4: memref<2x32xf32, #tpu.memory_space<vmem>>, %arg5: memref<2x1xi32, #tpu.memory_space<vmem>>, %arg6: memref<32x128xf32, #tpu.memory_space<vmem>>, %arg7: memref<32x128xf32, #tpu.memory_space<vmem>>, %arg8: memref<32x128xf32, #tpu.memory_space<vmem>>, %arg9: memref<32x128xf32, #tpu.memory_space<vmem>>, %arg10: memref<1x128xf32, #tpu.memory_space<vmem>>, %arg11: memref<2x128xf32, #tpu.memory_space<vmem>>, %arg12: memref<2x32xf32, #tpu.memory_space<vmem>>) attributes {dimension_semantics = [#tpu.dimension_semantics<arbitrary>], iteration_bounds = array<i64: 1>, scalar_prefetch = 0 : i64, scratch_operands = 0 : i64, tpu.core_type = #tpu.core_type<tc>, window_params = [{pipeline_mode = #tpu.pipeline_mode<synchronous>, transform_indices = @transform_0, window_bounds = array<i64: 8, 2, 128>}, {pipeline_mode = #tpu.pipeline_mode<synchronous>, transform_indices = @transform_1, window_bounds = array<i64: 6, 2, 128>}, {pipeline_mode = #tpu.pipeline_mode<synchronous>, transform_indices = @transform_2, window_bounds = array<i64: 2, 32>}, {pipeline_mode = #tpu.pipeline_mode<synchronous>, transform_indices = @transform_3, window_bounds = array<i64: 2, 32>}, {pipeline_mode = #tpu.pipeline_mode<synchronous>, transform_indices = @transform_4, window_bounds = array<i64: 2, 1>}, {pipeline_mode = #tpu.pipeline_mode<synchronous>, transform_indices = @transform_5, window_bounds = array<i64: 32, 128>}, {pipeline_mode = #tpu.pipeline_mode<synchronous>, transform_indices = @transform_6, window_bounds = array<i64: 32, 128>}, {pipeline_mode = #tpu.pipeline_mode<synchronous>, transform_indices = @transform_7, window_bounds = array<i64: 32, 128>}, {pipeline_mode = #tpu.pipeline_mode<synchronous>, transform_indices = @transform_8, window_bounds = array<i64: 32, 128>}, {pipeline_mode = #tpu.pipeline_mode<synchronous>, transform_indices = @transform_9, window_bounds = array<i64: 1, 128>}, {pipeline_mode = #tpu.pipeline_mode<synchronous>, transform_indices = @transform_10, window_bounds = array<i64: 2, 128>}, {pipeline_mode = #tpu.pipeline_mode<synchronous>, transform_indices = @transform_11, window_bounds = array<i64: 2, 32>}]} {
    %c0 = arith.constant 0 : index
    %c0_0 = arith.constant 0 : index
    %0 = vector.load %arg6[%c0, %c0_0] : memref<32x128xf32, #tpu.memory_space<vmem>>, vector<32x128xf32>
    %c0_1 = arith.constant 0 : index
    %c0_2 = arith.constant 0 : index
    %1 = vector.load %arg7[%c0_1, %c0_2] : memref<32x128xf32, #tpu.memory_space<vmem>>, vector<32x128xf32>
    %c0_3 = arith.constant 0 : index
    %c0_4 = arith.constant 0 : index
    %2 = vector.load %arg5[%c0_3, %c0_4] : memref<2x1xi32, #tpu.memory_space<vmem>>, vector<2x1xi32>
    %3 = tpu.iota {dimensions = array<i32: 1>} : vector<2x128xi32>
    %c64_i32 = arith.constant 64 : i32
    %4 = vector.broadcast %c64_i32 : i32 to vector<2x128xi32>
    %5 = arith.cmpi sge, %3, %4 : vector<2x128xi32>
    %c96_i32 = arith.constant 96 : i32
    %6 = vector.broadcast %c96_i32 : i32 to vector<2x128xi32>
    %7 = arith.cmpi slt, %3, %6 : vector<2x128xi32>
    %8 = arith.andi %5, %7 : vector<2x128xi1>
    %c0_5 = arith.constant 0 : index
    %c0_6 = arith.constant 0 : index
    %9 = vector.load %arg3[%c0_5, %c0_6] : memref<2x32xf32, #tpu.memory_space<vmem>>, vector<2x32xf32>
    %c0_7 = arith.constant 0 : index
    %c0_8 = arith.constant 0 : index
    %10 = vector.load %arg4[%c0_7, %c0_8] : memref<2x32xf32, #tpu.memory_space<vmem>>, vector<2x32xf32>
    %cst = arith.constant 0.000000e+00 : f32
    %11 = vector.broadcast %cst : f32 to vector<2x32xf32>
    %c0_9 = arith.constant 0 : index
    %c0_10 = arith.constant 0 : index
    %c0_11 = arith.constant 0 : index
    %12 = vector.load %arg1[%c0_9, %c0_10, %c0_11] : memref<8x2x128xf32, #tpu.memory_space<vmem>>, vector<1x2x128xf32>
    %13 = vector.shape_cast %12 : vector<1x2x128xf32> to vector<2x128xf32>
    %cst_12 = arith.constant dense<0.000000e+00> : vector<2x128xf32>
    %14 = tpu.matmul %9, %0, %cst_12 {dimension_numbers = #tpu.dot_dimension_numbers<[1], [0], [0], [1], [0, 0, 1, 1], [], []>} : vector<2x32xf32>, vector<32x128xf32>, vector<2x128xf32> -> vector<2x128xf32>
    %15 = arith.addf %13, %14 : vector<2x128xf32>
    %16 = math.tanh %15 : vector<2x128xf32>
    %17 = arith.negf %15 : vector<2x128xf32>
    %18 = math.exp %17 : vector<2x128xf32>
    %cst_13 = arith.constant 1.000000e+00 : f32
    %19 = vector.broadcast %cst_13 : f32 to vector<2x128xf32>
    %20 = arith.addf %19, %18 : vector<2x128xf32>
    %21 = arith.divf %19, %20 : vector<2x128xf32>
    %22 = arith.select %8, %16, %21 : vector<2x128xi1>, vector<2x128xf32>
    %23 = vector.extract_strided_slice %22 {offsets = [0, 0], sizes = [2, 32], strides = [1, 1]} : vector<2x128xf32> to vector<2x32xf32>
    %24 = vector.extract_strided_slice %22 {offsets = [0, 32], sizes = [2, 32], strides = [1, 1]} : vector<2x128xf32> to vector<2x32xf32>
    %25 = vector.extract_strided_slice %22 {offsets = [0, 64], sizes = [2, 32], strides = [1, 1]} : vector<2x128xf32> to vector<2x32xf32>
    %26 = vector.extract_strided_slice %22 {offsets = [0, 96], sizes = [2, 32], strides = [1, 1]} : vector<2x128xf32> to vector<2x32xf32>
    %27 = arith.mulf %24, %10 : vector<2x32xf32>
    %28 = arith.mulf %23, %25 : vector<2x32xf32>
    %29 = arith.addf %27, %28 : vector<2x32xf32>
    %30 = math.tanh %29 : vector<2x32xf32>
    %31 = arith.mulf %26, %30 : vector<2x32xf32>
    %c0_14 = arith.constant 0 : index
    %c0_15 = arith.constant 0 : index
    %c0_16 = arith.constant 0 : index
    %32 = vector.load %arg2[%c0_14, %c0_15, %c0_16] : memref<6x2x128xf32, #tpu.memory_space<vmem>>, vector<1x2x128xf32>
    %33 = vector.shape_cast %32 : vector<1x2x128xf32> to vector<2x128xf32>
    %cst_17 = arith.constant dense<0.000000e+00> : vector<2x128xf32>
    %34 = tpu.matmul %11, %1, %cst_17 {dimension_numbers = #tpu.dot_dimension_numbers<[1], [0], [0], [1], [0, 0, 1, 1], [], []>} : vector<2x32xf32>, vector<32x128xf32>, vector<2x128xf32> -> vector<2x128xf32>
    %35 = arith.addf %33, %34 : vector<2x128xf32>
    %36 = math.tanh %35 : vector<2x128xf32>
    %37 = arith.negf %35 : vector<2x128xf32>
    %38 = math.exp %37 : vector<2x128xf32>
    %cst_18 = arith.constant 1.000000e+00 : f32
    %39 = vector.broadcast %cst_18 : f32 to vector<2x128xf32>
    %40 = arith.addf %39, %38 : vector<2x128xf32>
    %41 = arith.divf %39, %40 : vector<2x128xf32>
    %42 = arith.select %8, %36, %41 : vector<2x128xi1>, vector<2x128xf32>
    %43 = vector.extract_strided_slice %42 {offsets = [0, 0], sizes = [2, 32], strides = [1, 1]} : vector<2x128xf32> to vector<2x32xf32>
    %44 = vector.extract_strided_slice %42 {offsets = [0, 32], sizes = [2, 32], strides = [1, 1]} : vector<2x128xf32> to vector<2x32xf32>
    %45 = vector.extract_strided_slice %42 {offsets = [0, 64], sizes = [2, 32], strides = [1, 1]} : vector<2x128xf32> to vector<2x32xf32>
    %46 = vector.extract_strided_slice %42 {offsets = [0, 96], sizes = [2, 32], strides = [1, 1]} : vector<2x128xf32> to vector<2x32xf32>
    %47 = arith.mulf %44, %11 : vector<2x32xf32>
    %48 = arith.mulf %43, %45 : vector<2x32xf32>
    %49 = arith.addf %47, %48 : vector<2x32xf32>
    %50 = math.tanh %49 : vector<2x32xf32>
    %51 = arith.mulf %46, %50 : vector<2x32xf32>
    %c1_i32 = arith.constant 1 : i32
    %52 = vector.broadcast %c1_i32 : i32 to vector<2x1xi32>
    %53 = arith.cmpi eq, %2, %52 : vector<2x1xi32>
    %54 = vector.shape_cast %53 : vector<2x1xi1> to vector<2x1xi1>
    %55 = vector.broadcast %54 : vector<2x1xi1> to vector<2x32xi1>
    %56 = arith.select %55, %51, %11 : vector<2x32xi1>, vector<2x32xf32>
    %c1 = arith.constant 1 : index
    %c0_19 = arith.constant 0 : index
    %c0_20 = arith.constant 0 : index
    %57 = vector.load %arg1[%c1, %c0_19, %c0_20] : memref<8x2x128xf32, #tpu.memory_space<vmem>>, vector<1x2x128xf32>
    %58 = vector.shape_cast %57 : vector<1x2x128xf32> to vector<2x128xf32>
    %cst_21 = arith.constant dense<0.000000e+00> : vector<2x128xf32>
    %59 = tpu.matmul %31, %0, %cst_21 {dimension_numbers = #tpu.dot_dimension_numbers<[1], [0], [0], [1], [0, 0, 1, 1], [], []>} : vector<2x32xf32>, vector<32x128xf32>, vector<2x128xf32> -> vector<2x128xf32>
    %60 = arith.addf %58, %59 : vector<2x128xf32>
    %61 = math.tanh %60 : vector<2x128xf32>
    %62 = arith.negf %60 : vector<2x128xf32>
    %63 = math.exp %62 : vector<2x128xf32>
    %cst_22 = arith.constant 1.000000e+00 : f32
    %64 = vector.broadcast %cst_22 : f32 to vector<2x128xf32>
    %65 = arith.addf %64, %63 : vector<2x128xf32>
    %66 = arith.divf %64, %65 : vector<2x128xf32>
    %67 = arith.select %8, %61, %66 : vector<2x128xi1>, vector<2x128xf32>
    %68 = vector.extract_strided_slice %67 {offsets = [0, 0], sizes = [2, 32], strides = [1, 1]} : vector<2x128xf32> to vector<2x32xf32>
    %69 = vector.extract_strided_slice %67 {offsets = [0, 32], sizes = [2, 32], strides = [1, 1]} : vector<2x128xf32> to vector<2x32xf32>
    %70 = vector.extract_strided_slice %67 {offsets = [0, 64], sizes = [2, 32], strides = [1, 1]} : vector<2x128xf32> to vector<2x32xf32>
    %71 = vector.extract_strided_slice %67 {offsets = [0, 96], sizes = [2, 32], strides = [1, 1]} : vector<2x128xf32> to vector<2x32xf32>
    %72 = arith.mulf %69, %29 : vector<2x32xf32>
    %73 = arith.mulf %68, %70 : vector<2x32xf32>
    %74 = arith.addf %72, %73 : vector<2x32xf32>
    %75 = math.tanh %74 : vector<2x32xf32>
    %76 = arith.mulf %71, %75 : vector<2x32xf32>
    %c1_23 = arith.constant 1 : index
    %c0_24 = arith.constant 0 : index
    %c0_25 = arith.constant 0 : index
    %77 = vector.load %arg2[%c1_23, %c0_24, %c0_25] : memref<6x2x128xf32, #tpu.memory_space<vmem>>, vector<1x2x128xf32>
    %78 = vector.shape_cast %77 : vector<1x2x128xf32> to vector<2x128xf32>
    %cst_26 = arith.constant dense<0.000000e+00> : vector<2x128xf32>
    %79 = tpu.matmul %51, %1, %cst_26 {dimension_numbers = #tpu.dot_dimension_numbers<[1], [0], [0], [1], [0, 0, 1, 1], [], []>} : vector<2x32xf32>, vector<32x128xf32>, vector<2x128xf32> -> vector<2x128xf32>
    %80 = arith.addf %78, %79 : vector<2x128xf32>
    %81 = math.tanh %80 : vector<2x128xf32>
    %82 = arith.negf %80 : vector<2x128xf32>
    %83 = math.exp %82 : vector<2x128xf32>
    %cst_27 = arith.constant 1.000000e+00 : f32
    %84 = vector.broadcast %cst_27 : f32 to vector<2x128xf32>
    %85 = arith.addf %84, %83 : vector<2x128xf32>
    %86 = arith.divf %84, %85 : vector<2x128xf32>
    %87 = arith.select %8, %81, %86 : vector<2x128xi1>, vector<2x128xf32>
    %88 = vector.extract_strided_slice %87 {offsets = [0, 0], sizes = [2, 32], strides = [1, 1]} : vector<2x128xf32> to vector<2x32xf32>
    %89 = vector.extract_strided_slice %87 {offsets = [0, 32], sizes = [2, 32], strides = [1, 1]} : vector<2x128xf32> to vector<2x32xf32>
    %90 = vector.extract_strided_slice %87 {offsets = [0, 64], sizes = [2, 32], strides = [1, 1]} : vector<2x128xf32> to vector<2x32xf32>
    %91 = vector.extract_strided_slice %87 {offsets = [0, 96], sizes = [2, 32], strides = [1, 1]} : vector<2x128xf32> to vector<2x32xf32>
    %92 = arith.mulf %89, %49 : vector<2x32xf32>
    %93 = arith.mulf %88, %90 : vector<2x32xf32>
    %94 = arith.addf %92, %93 : vector<2x32xf32>
    %95 = math.tanh %94 : vector<2x32xf32>
    %96 = arith.mulf %91, %95 : vector<2x32xf32>
    %c2_i32 = arith.constant 2 : i32
    %97 = vector.broadcast %c2_i32 : i32 to vector<2x1xi32>
    %98 = arith.cmpi eq, %2, %97 : vector<2x1xi32>
    %99 = vector.shape_cast %98 : vector<2x1xi1> to vector<2x1xi1>
    %100 = vector.broadcast %99 : vector<2x1xi1> to vector<2x32xi1>
    %101 = arith.select %100, %96, %56 : vector<2x32xi1>, vector<2x32xf32>
    %c2 = arith.constant 2 : index
    %c0_28 = arith.constant 0 : index
    %c0_29 = arith.constant 0 : index
    %102 = vector.load %arg1[%c2, %c0_28, %c0_29] : memref<8x2x128xf32, #tpu.memory_space<vmem>>, vector<1x2x128xf32>
    %103 = vector.shape_cast %102 : vector<1x2x128xf32> to vector<2x128xf32>
    %cst_30 = arith.constant dense<0.000000e+00> : vector<2x128xf32>
    %104 = tpu.matmul %76, %0, %cst_30 {dimension_numbers = #tpu.dot_dimension_numbers<[1], [0], [0], [1], [0, 0, 1, 1], [], []>} : vector<2x32xf32>, vector<32x128xf32>, vector<2x128xf32> -> vector<2x128xf32>
    %105 = arith.addf %103, %104 : vector<2x128xf32>
    %106 = math.tanh %105 : vector<2x128xf32>
    %107 = arith.negf %105 : vector<2x128xf32>
    %108 = math.exp %107 : vector<2x128xf32>
    %cst_31 = arith.constant 1.000000e+00 : f32
    %109 = vector.broadcast %cst_31 : f32 to vector<2x128xf32>
    %110 = arith.addf %109, %108 : vector<2x128xf32>
    %111 = arith.divf %109, %110 : vector<2x128xf32>
    %112 = arith.select %8, %106, %111 : vector<2x128xi1>, vector<2x128xf32>
    %113 = vector.extract_strided_slice %112 {offsets = [0, 0], sizes = [2, 32], strides = [1, 1]} : vector<2x128xf32> to vector<2x32xf32>
    %114 = vector.extract_strided_slice %112 {offsets = [0, 32], sizes = [2, 32], strides = [1, 1]} : vector<2x128xf32> to vector<2x32xf32>
    %115 = vector.extract_strided_slice %112 {offsets = [0, 64], sizes = [2, 32], strides = [1, 1]} : vector<2x128xf32> to vector<2x32xf32>
    %116 = vector.extract_strided_slice %112 {offsets = [0, 96], sizes = [2, 32], strides = [1, 1]} : vector<2x128xf32> to vector<2x32xf32>
    %117 = arith.mulf %114, %74 : vector<2x32xf32>
    %118 = arith.mulf %113, %115 : vector<2x32xf32>
    %119 = arith.addf %117, %118 : vector<2x32xf32>
    %120 = math.tanh %119 : vector<2x32xf32>
    %121 = arith.mulf %116, %120 : vector<2x32xf32>
    %c2_32 = arith.constant 2 : index
    %c0_33 = arith.constant 0 : index
    %c0_34 = arith.constant 0 : index
    %122 = vector.load %arg2[%c2_32, %c0_33, %c0_34] : memref<6x2x128xf32, #tpu.memory_space<vmem>>, vector<1x2x128xf32>
    %123 = vector.shape_cast %122 : vector<1x2x128xf32> to vector<2x128xf32>
    %cst_35 = arith.constant dense<0.000000e+00> : vector<2x128xf32>
    %124 = tpu.matmul %96, %1, %cst_35 {dimension_numbers = #tpu.dot_dimension_numbers<[1], [0], [0], [1], [0, 0, 1, 1], [], []>} : vector<2x32xf32>, vector<32x128xf32>, vector<2x128xf32> -> vector<2x128xf32>
    %125 = arith.addf %123, %124 : vector<2x128xf32>
    %126 = math.tanh %125 : vector<2x128xf32>
    %127 = arith.negf %125 : vector<2x128xf32>
    %128 = math.exp %127 : vector<2x128xf32>
    %cst_36 = arith.constant 1.000000e+00 : f32
    %129 = vector.broadcast %cst_36 : f32 to vector<2x128xf32>
    %130 = arith.addf %129, %128 : vector<2x128xf32>
    %131 = arith.divf %129, %130 : vector<2x128xf32>
    %132 = arith.select %8, %126, %131 : vector<2x128xi1>, vector<2x128xf32>
    %133 = vector.extract_strided_slice %132 {offsets = [0, 0], sizes = [2, 32], strides = [1, 1]} : vector<2x128xf32> to vector<2x32xf32>
    %134 = vector.extract_strided_slice %132 {offsets = [0, 32], sizes = [2, 32], strides = [1, 1]} : vector<2x128xf32> to vector<2x32xf32>
    %135 = vector.extract_strided_slice %132 {offsets = [0, 64], sizes = [2, 32], strides = [1, 1]} : vector<2x128xf32> to vector<2x32xf32>
    %136 = vector.extract_strided_slice %132 {offsets = [0, 96], sizes = [2, 32], strides = [1, 1]} : vector<2x128xf32> to vector<2x32xf32>
    %137 = arith.mulf %134, %94 : vector<2x32xf32>
    %138 = arith.mulf %133, %135 : vector<2x32xf32>
    %139 = arith.addf %137, %138 : vector<2x32xf32>
    %140 = math.tanh %139 : vector<2x32xf32>
    %141 = arith.mulf %136, %140 : vector<2x32xf32>
    %c3_i32 = arith.constant 3 : i32
    %142 = vector.broadcast %c3_i32 : i32 to vector<2x1xi32>
    %143 = arith.cmpi eq, %2, %142 : vector<2x1xi32>
    %144 = vector.shape_cast %143 : vector<2x1xi1> to vector<2x1xi1>
    %145 = vector.broadcast %144 : vector<2x1xi1> to vector<2x32xi1>
    %146 = arith.select %145, %141, %101 : vector<2x32xi1>, vector<2x32xf32>
    %c3 = arith.constant 3 : index
    %c0_37 = arith.constant 0 : index
    %c0_38 = arith.constant 0 : index
    %147 = vector.load %arg1[%c3, %c0_37, %c0_38] : memref<8x2x128xf32, #tpu.memory_space<vmem>>, vector<1x2x128xf32>
    %148 = vector.shape_cast %147 : vector<1x2x128xf32> to vector<2x128xf32>
    %cst_39 = arith.constant dense<0.000000e+00> : vector<2x128xf32>
    %149 = tpu.matmul %121, %0, %cst_39 {dimension_numbers = #tpu.dot_dimension_numbers<[1], [0], [0], [1], [0, 0, 1, 1], [], []>} : vector<2x32xf32>, vector<32x128xf32>, vector<2x128xf32> -> vector<2x128xf32>
    %150 = arith.addf %148, %149 : vector<2x128xf32>
    %151 = math.tanh %150 : vector<2x128xf32>
    %152 = arith.negf %150 : vector<2x128xf32>
    %153 = math.exp %152 : vector<2x128xf32>
    %cst_40 = arith.constant 1.000000e+00 : f32
    %154 = vector.broadcast %cst_40 : f32 to vector<2x128xf32>
    %155 = arith.addf %154, %153 : vector<2x128xf32>
    %156 = arith.divf %154, %155 : vector<2x128xf32>
    %157 = arith.select %8, %151, %156 : vector<2x128xi1>, vector<2x128xf32>
    %158 = vector.extract_strided_slice %157 {offsets = [0, 0], sizes = [2, 32], strides = [1, 1]} : vector<2x128xf32> to vector<2x32xf32>
    %159 = vector.extract_strided_slice %157 {offsets = [0, 32], sizes = [2, 32], strides = [1, 1]} : vector<2x128xf32> to vector<2x32xf32>
    %160 = vector.extract_strided_slice %157 {offsets = [0, 64], sizes = [2, 32], strides = [1, 1]} : vector<2x128xf32> to vector<2x32xf32>
    %161 = vector.extract_strided_slice %157 {offsets = [0, 96], sizes = [2, 32], strides = [1, 1]} : vector<2x128xf32> to vector<2x32xf32>
    %162 = arith.mulf %159, %119 : vector<2x32xf32>
    %163 = arith.mulf %158, %160 : vector<2x32xf32>
    %164 = arith.addf %162, %163 : vector<2x32xf32>
    %165 = math.tanh %164 : vector<2x32xf32>
    %166 = arith.mulf %161, %165 : vector<2x32xf32>
    %c3_41 = arith.constant 3 : index
    %c0_42 = arith.constant 0 : index
    %c0_43 = arith.constant 0 : index
    %167 = vector.load %arg2[%c3_41, %c0_42, %c0_43] : memref<6x2x128xf32, #tpu.memory_space<vmem>>, vector<1x2x128xf32>
    %168 = vector.shape_cast %167 : vector<1x2x128xf32> to vector<2x128xf32>
    %cst_44 = arith.constant dense<0.000000e+00> : vector<2x128xf32>
    %169 = tpu.matmul %141, %1, %cst_44 {dimension_numbers = #tpu.dot_dimension_numbers<[1], [0], [0], [1], [0, 0, 1, 1], [], []>} : vector<2x32xf32>, vector<32x128xf32>, vector<2x128xf32> -> vector<2x128xf32>
    %170 = arith.addf %168, %169 : vector<2x128xf32>
    %171 = math.tanh %170 : vector<2x128xf32>
    %172 = arith.negf %170 : vector<2x128xf32>
    %173 = math.exp %172 : vector<2x128xf32>
    %cst_45 = arith.constant 1.000000e+00 : f32
    %174 = vector.broadcast %cst_45 : f32 to vector<2x128xf32>
    %175 = arith.addf %174, %173 : vector<2x128xf32>
    %176 = arith.divf %174, %175 : vector<2x128xf32>
    %177 = arith.select %8, %171, %176 : vector<2x128xi1>, vector<2x128xf32>
    %178 = vector.extract_strided_slice %177 {offsets = [0, 0], sizes = [2, 32], strides = [1, 1]} : vector<2x128xf32> to vector<2x32xf32>
    %179 = vector.extract_strided_slice %177 {offsets = [0, 32], sizes = [2, 32], strides = [1, 1]} : vector<2x128xf32> to vector<2x32xf32>
    %180 = vector.extract_strided_slice %177 {offsets = [0, 64], sizes = [2, 32], strides = [1, 1]} : vector<2x128xf32> to vector<2x32xf32>
    %181 = vector.extract_strided_slice %177 {offsets = [0, 96], sizes = [2, 32], strides = [1, 1]} : vector<2x128xf32> to vector<2x32xf32>
    %182 = arith.mulf %179, %139 : vector<2x32xf32>
    %183 = arith.mulf %178, %180 : vector<2x32xf32>
    %184 = arith.addf %182, %183 : vector<2x32xf32>
    %185 = math.tanh %184 : vector<2x32xf32>
    %186 = arith.mulf %181, %185 : vector<2x32xf32>
    %c4_i32 = arith.constant 4 : i32
    %187 = vector.broadcast %c4_i32 : i32 to vector<2x1xi32>
    %188 = arith.cmpi eq, %2, %187 : vector<2x1xi32>
    %189 = vector.shape_cast %188 : vector<2x1xi1> to vector<2x1xi1>
    %190 = vector.broadcast %189 : vector<2x1xi1> to vector<2x32xi1>
    %191 = arith.select %190, %186, %146 : vector<2x32xi1>, vector<2x32xf32>
    %c4 = arith.constant 4 : index
    %c0_46 = arith.constant 0 : index
    %c0_47 = arith.constant 0 : index
    %192 = vector.load %arg1[%c4, %c0_46, %c0_47] : memref<8x2x128xf32, #tpu.memory_space<vmem>>, vector<1x2x128xf32>
    %193 = vector.shape_cast %192 : vector<1x2x128xf32> to vector<2x128xf32>
    %cst_48 = arith.constant dense<0.000000e+00> : vector<2x128xf32>
    %194 = tpu.matmul %166, %0, %cst_48 {dimension_numbers = #tpu.dot_dimension_numbers<[1], [0], [0], [1], [0, 0, 1, 1], [], []>} : vector<2x32xf32>, vector<32x128xf32>, vector<2x128xf32> -> vector<2x128xf32>
    %195 = arith.addf %193, %194 : vector<2x128xf32>
    %196 = math.tanh %195 : vector<2x128xf32>
    %197 = arith.negf %195 : vector<2x128xf32>
    %198 = math.exp %197 : vector<2x128xf32>
    %cst_49 = arith.constant 1.000000e+00 : f32
    %199 = vector.broadcast %cst_49 : f32 to vector<2x128xf32>
    %200 = arith.addf %199, %198 : vector<2x128xf32>
    %201 = arith.divf %199, %200 : vector<2x128xf32>
    %202 = arith.select %8, %196, %201 : vector<2x128xi1>, vector<2x128xf32>
    %203 = vector.extract_strided_slice %202 {offsets = [0, 0], sizes = [2, 32], strides = [1, 1]} : vector<2x128xf32> to vector<2x32xf32>
    %204 = vector.extract_strided_slice %202 {offsets = [0, 32], sizes = [2, 32], strides = [1, 1]} : vector<2x128xf32> to vector<2x32xf32>
    %205 = vector.extract_strided_slice %202 {offsets = [0, 64], sizes = [2, 32], strides = [1, 1]} : vector<2x128xf32> to vector<2x32xf32>
    %206 = vector.extract_strided_slice %202 {offsets = [0, 96], sizes = [2, 32], strides = [1, 1]} : vector<2x128xf32> to vector<2x32xf32>
    %207 = arith.mulf %204, %164 : vector<2x32xf32>
    %208 = arith.mulf %203, %205 : vector<2x32xf32>
    %209 = arith.addf %207, %208 : vector<2x32xf32>
    %210 = math.tanh %209 : vector<2x32xf32>
    %211 = arith.mulf %206, %210 : vector<2x32xf32>
    %c4_50 = arith.constant 4 : index
    %c0_51 = arith.constant 0 : index
    %c0_52 = arith.constant 0 : index
    %212 = vector.load %arg2[%c4_50, %c0_51, %c0_52] : memref<6x2x128xf32, #tpu.memory_space<vmem>>, vector<1x2x128xf32>
    %213 = vector.shape_cast %212 : vector<1x2x128xf32> to vector<2x128xf32>
    %cst_53 = arith.constant dense<0.000000e+00> : vector<2x128xf32>
    %214 = tpu.matmul %186, %1, %cst_53 {dimension_numbers = #tpu.dot_dimension_numbers<[1], [0], [0], [1], [0, 0, 1, 1], [], []>} : vector<2x32xf32>, vector<32x128xf32>, vector<2x128xf32> -> vector<2x128xf32>
    %215 = arith.addf %213, %214 : vector<2x128xf32>
    %216 = math.tanh %215 : vector<2x128xf32>
    %217 = arith.negf %215 : vector<2x128xf32>
    %218 = math.exp %217 : vector<2x128xf32>
    %cst_54 = arith.constant 1.000000e+00 : f32
    %219 = vector.broadcast %cst_54 : f32 to vector<2x128xf32>
    %220 = arith.addf %219, %218 : vector<2x128xf32>
    %221 = arith.divf %219, %220 : vector<2x128xf32>
    %222 = arith.select %8, %216, %221 : vector<2x128xi1>, vector<2x128xf32>
    %223 = vector.extract_strided_slice %222 {offsets = [0, 0], sizes = [2, 32], strides = [1, 1]} : vector<2x128xf32> to vector<2x32xf32>
    %224 = vector.extract_strided_slice %222 {offsets = [0, 32], sizes = [2, 32], strides = [1, 1]} : vector<2x128xf32> to vector<2x32xf32>
    %225 = vector.extract_strided_slice %222 {offsets = [0, 64], sizes = [2, 32], strides = [1, 1]} : vector<2x128xf32> to vector<2x32xf32>
    %226 = vector.extract_strided_slice %222 {offsets = [0, 96], sizes = [2, 32], strides = [1, 1]} : vector<2x128xf32> to vector<2x32xf32>
    %227 = arith.mulf %224, %184 : vector<2x32xf32>
    %228 = arith.mulf %223, %225 : vector<2x32xf32>
    %229 = arith.addf %227, %228 : vector<2x32xf32>
    %230 = math.tanh %229 : vector<2x32xf32>
    %231 = arith.mulf %226, %230 : vector<2x32xf32>
    %c5_i32 = arith.constant 5 : i32
    %232 = vector.broadcast %c5_i32 : i32 to vector<2x1xi32>
    %233 = arith.cmpi eq, %2, %232 : vector<2x1xi32>
    %234 = vector.shape_cast %233 : vector<2x1xi1> to vector<2x1xi1>
    %235 = vector.broadcast %234 : vector<2x1xi1> to vector<2x32xi1>
    %236 = arith.select %235, %231, %191 : vector<2x32xi1>, vector<2x32xf32>
    %c5 = arith.constant 5 : index
    %c0_55 = arith.constant 0 : index
    %c0_56 = arith.constant 0 : index
    %237 = vector.load %arg1[%c5, %c0_55, %c0_56] : memref<8x2x128xf32, #tpu.memory_space<vmem>>, vector<1x2x128xf32>
    %238 = vector.shape_cast %237 : vector<1x2x128xf32> to vector<2x128xf32>
    %cst_57 = arith.constant dense<0.000000e+00> : vector<2x128xf32>
    %239 = tpu.matmul %211, %0, %cst_57 {dimension_numbers = #tpu.dot_dimension_numbers<[1], [0], [0], [1], [0, 0, 1, 1], [], []>} : vector<2x32xf32>, vector<32x128xf32>, vector<2x128xf32> -> vector<2x128xf32>
    %240 = arith.addf %238, %239 : vector<2x128xf32>
    %241 = math.tanh %240 : vector<2x128xf32>
    %242 = arith.negf %240 : vector<2x128xf32>
    %243 = math.exp %242 : vector<2x128xf32>
    %cst_58 = arith.constant 1.000000e+00 : f32
    %244 = vector.broadcast %cst_58 : f32 to vector<2x128xf32>
    %245 = arith.addf %244, %243 : vector<2x128xf32>
    %246 = arith.divf %244, %245 : vector<2x128xf32>
    %247 = arith.select %8, %241, %246 : vector<2x128xi1>, vector<2x128xf32>
    %248 = vector.extract_strided_slice %247 {offsets = [0, 0], sizes = [2, 32], strides = [1, 1]} : vector<2x128xf32> to vector<2x32xf32>
    %249 = vector.extract_strided_slice %247 {offsets = [0, 32], sizes = [2, 32], strides = [1, 1]} : vector<2x128xf32> to vector<2x32xf32>
    %250 = vector.extract_strided_slice %247 {offsets = [0, 64], sizes = [2, 32], strides = [1, 1]} : vector<2x128xf32> to vector<2x32xf32>
    %251 = vector.extract_strided_slice %247 {offsets = [0, 96], sizes = [2, 32], strides = [1, 1]} : vector<2x128xf32> to vector<2x32xf32>
    %252 = arith.mulf %249, %209 : vector<2x32xf32>
    %253 = arith.mulf %248, %250 : vector<2x32xf32>
    %254 = arith.addf %252, %253 : vector<2x32xf32>
    %255 = math.tanh %254 : vector<2x32xf32>
    %256 = arith.mulf %251, %255 : vector<2x32xf32>
    %c5_59 = arith.constant 5 : index
    %c0_60 = arith.constant 0 : index
    %c0_61 = arith.constant 0 : index
    %257 = vector.load %arg2[%c5_59, %c0_60, %c0_61] : memref<6x2x128xf32, #tpu.memory_space<vmem>>, vector<1x2x128xf32>
    %258 = vector.shape_cast %257 : vector<1x2x128xf32> to vector<2x128xf32>
    %cst_62 = arith.constant dense<0.000000e+00> : vector<2x128xf32>
    %259 = tpu.matmul %231, %1, %cst_62 {dimension_numbers = #tpu.dot_dimension_numbers<[1], [0], [0], [1], [0, 0, 1, 1], [], []>} : vector<2x32xf32>, vector<32x128xf32>, vector<2x128xf32> -> vector<2x128xf32>
    %260 = arith.addf %258, %259 : vector<2x128xf32>
    %261 = math.tanh %260 : vector<2x128xf32>
    %262 = arith.negf %260 : vector<2x128xf32>
    %263 = math.exp %262 : vector<2x128xf32>
    %cst_63 = arith.constant 1.000000e+00 : f32
    %264 = vector.broadcast %cst_63 : f32 to vector<2x128xf32>
    %265 = arith.addf %264, %263 : vector<2x128xf32>
    %266 = arith.divf %264, %265 : vector<2x128xf32>
    %267 = arith.select %8, %261, %266 : vector<2x128xi1>, vector<2x128xf32>
    %268 = vector.extract_strided_slice %267 {offsets = [0, 0], sizes = [2, 32], strides = [1, 1]} : vector<2x128xf32> to vector<2x32xf32>
    %269 = vector.extract_strided_slice %267 {offsets = [0, 32], sizes = [2, 32], strides = [1, 1]} : vector<2x128xf32> to vector<2x32xf32>
    %270 = vector.extract_strided_slice %267 {offsets = [0, 64], sizes = [2, 32], strides = [1, 1]} : vector<2x128xf32> to vector<2x32xf32>
    %271 = vector.extract_strided_slice %267 {offsets = [0, 96], sizes = [2, 32], strides = [1, 1]} : vector<2x128xf32> to vector<2x32xf32>
    %272 = arith.mulf %269, %229 : vector<2x32xf32>
    %273 = arith.mulf %268, %270 : vector<2x32xf32>
    %274 = arith.addf %272, %273 : vector<2x32xf32>
    %275 = math.tanh %274 : vector<2x32xf32>
    %276 = arith.mulf %271, %275 : vector<2x32xf32>
    %c6_i32 = arith.constant 6 : i32
    %277 = vector.broadcast %c6_i32 : i32 to vector<2x1xi32>
    %278 = arith.cmpi eq, %2, %277 : vector<2x1xi32>
    %279 = vector.shape_cast %278 : vector<2x1xi1> to vector<2x1xi1>
    %280 = vector.broadcast %279 : vector<2x1xi1> to vector<2x32xi1>
    %281 = arith.select %280, %276, %236 : vector<2x32xi1>, vector<2x32xf32>
    %c6 = arith.constant 6 : index
    %c0_64 = arith.constant 0 : index
    %c0_65 = arith.constant 0 : index
    %282 = vector.load %arg1[%c6, %c0_64, %c0_65] : memref<8x2x128xf32, #tpu.memory_space<vmem>>, vector<1x2x128xf32>
    %283 = vector.shape_cast %282 : vector<1x2x128xf32> to vector<2x128xf32>
    %cst_66 = arith.constant dense<0.000000e+00> : vector<2x128xf32>
    %284 = tpu.matmul %256, %0, %cst_66 {dimension_numbers = #tpu.dot_dimension_numbers<[1], [0], [0], [1], [0, 0, 1, 1], [], []>} : vector<2x32xf32>, vector<32x128xf32>, vector<2x128xf32> -> vector<2x128xf32>
    %285 = arith.addf %283, %284 : vector<2x128xf32>
    %286 = math.tanh %285 : vector<2x128xf32>
    %287 = arith.negf %285 : vector<2x128xf32>
    %288 = math.exp %287 : vector<2x128xf32>
    %cst_67 = arith.constant 1.000000e+00 : f32
    %289 = vector.broadcast %cst_67 : f32 to vector<2x128xf32>
    %290 = arith.addf %289, %288 : vector<2x128xf32>
    %291 = arith.divf %289, %290 : vector<2x128xf32>
    %292 = arith.select %8, %286, %291 : vector<2x128xi1>, vector<2x128xf32>
    %293 = vector.extract_strided_slice %292 {offsets = [0, 0], sizes = [2, 32], strides = [1, 1]} : vector<2x128xf32> to vector<2x32xf32>
    %294 = vector.extract_strided_slice %292 {offsets = [0, 32], sizes = [2, 32], strides = [1, 1]} : vector<2x128xf32> to vector<2x32xf32>
    %295 = vector.extract_strided_slice %292 {offsets = [0, 64], sizes = [2, 32], strides = [1, 1]} : vector<2x128xf32> to vector<2x32xf32>
    %296 = vector.extract_strided_slice %292 {offsets = [0, 96], sizes = [2, 32], strides = [1, 1]} : vector<2x128xf32> to vector<2x32xf32>
    %297 = arith.mulf %294, %254 : vector<2x32xf32>
    %298 = arith.mulf %293, %295 : vector<2x32xf32>
    %299 = arith.addf %297, %298 : vector<2x32xf32>
    %300 = math.tanh %299 : vector<2x32xf32>
    %301 = arith.mulf %296, %300 : vector<2x32xf32>
    %c7 = arith.constant 7 : index
    %c0_68 = arith.constant 0 : index
    %c0_69 = arith.constant 0 : index
    %302 = vector.load %arg1[%c7, %c0_68, %c0_69] : memref<8x2x128xf32, #tpu.memory_space<vmem>>, vector<1x2x128xf32>
    %303 = vector.shape_cast %302 : vector<1x2x128xf32> to vector<2x128xf32>
    %cst_70 = arith.constant dense<0.000000e+00> : vector<2x128xf32>
    %304 = tpu.matmul %301, %0, %cst_70 {dimension_numbers = #tpu.dot_dimension_numbers<[1], [0], [0], [1], [0, 0, 1, 1], [], []>} : vector<2x32xf32>, vector<32x128xf32>, vector<2x128xf32> -> vector<2x128xf32>
    %305 = arith.addf %303, %304 : vector<2x128xf32>
    %306 = math.tanh %305 : vector<2x128xf32>
    %307 = arith.negf %305 : vector<2x128xf32>
    %308 = math.exp %307 : vector<2x128xf32>
    %cst_71 = arith.constant 1.000000e+00 : f32
    %309 = vector.broadcast %cst_71 : f32 to vector<2x128xf32>
    %310 = arith.addf %309, %308 : vector<2x128xf32>
    %311 = arith.divf %309, %310 : vector<2x128xf32>
    %312 = arith.select %8, %306, %311 : vector<2x128xi1>, vector<2x128xf32>
    %313 = vector.extract_strided_slice %312 {offsets = [0, 0], sizes = [2, 32], strides = [1, 1]} : vector<2x128xf32> to vector<2x32xf32>
    %314 = vector.extract_strided_slice %312 {offsets = [0, 32], sizes = [2, 32], strides = [1, 1]} : vector<2x128xf32> to vector<2x32xf32>
    %315 = vector.extract_strided_slice %312 {offsets = [0, 64], sizes = [2, 32], strides = [1, 1]} : vector<2x128xf32> to vector<2x32xf32>
    %316 = vector.extract_strided_slice %312 {offsets = [0, 96], sizes = [2, 32], strides = [1, 1]} : vector<2x128xf32> to vector<2x32xf32>
    %317 = arith.mulf %314, %299 : vector<2x32xf32>
    %318 = arith.mulf %313, %315 : vector<2x32xf32>
    %319 = arith.addf %317, %318 : vector<2x32xf32>
    %320 = math.tanh %319 : vector<2x32xf32>
    %321 = arith.mulf %316, %320 : vector<2x32xf32>
    %c0_72 = arith.constant 0 : index
    %c0_73 = arith.constant 0 : index
    %322 = vector.load %arg8[%c0_72, %c0_73] : memref<32x128xf32, #tpu.memory_space<vmem>>, vector<32x128xf32>
    %cst_74 = arith.constant dense<0.000000e+00> : vector<2x128xf32>
    %323 = tpu.matmul %321, %322, %cst_74 {dimension_numbers = #tpu.dot_dimension_numbers<[1], [0], [0], [1], [0, 0, 1, 1], [], []>} : vector<2x32xf32>, vector<32x128xf32>, vector<2x128xf32> -> vector<2x128xf32>
    %c0_75 = arith.constant 0 : index
    %c0_76 = arith.constant 0 : index
    %324 = vector.load %arg9[%c0_75, %c0_76] : memref<32x128xf32, #tpu.memory_space<vmem>>, vector<32x128xf32>
    %cst_77 = arith.constant dense<0.000000e+00> : vector<2x128xf32>
    %325 = tpu.matmul %281, %324, %cst_77 {dimension_numbers = #tpu.dot_dimension_numbers<[1], [0], [0], [1], [0, 0, 1, 1], [], []>} : vector<2x32xf32>, vector<32x128xf32>, vector<2x128xf32> -> vector<2x128xf32>
    %326 = arith.addf %323, %325 : vector<2x128xf32>
    %c0_78 = arith.constant 0 : index
    %c0_79 = arith.constant 0 : index
    %327 = vector.load %arg10[%c0_78, %c0_79] : memref<1x128xf32, #tpu.memory_space<vmem>>, vector<1x128xf32>
    %328 = vector.broadcast %327 : vector<1x128xf32> to vector<2x128xf32>
    %329 = arith.addf %326, %328 : vector<2x128xf32>
    %c0_80 = arith.constant 0 : index
    %c0_81 = arith.constant 0 : index
    %330 = vector.load %arg11[%c0_80, %c0_81] : memref<2x128xf32, #tpu.memory_space<vmem>>, vector<2x128xf32>
    tpu.vector_store %arg11[%c0_80, %c0_81], %329 {strides = array<i32>} : memref<2x128xf32, #tpu.memory_space<vmem>>, vector<2x128xf32>,
    %c0_82 = arith.constant 0 : index
    %c0_83 = arith.constant 0 : index
    %331 = vector.load %arg12[%c0_82, %c0_83] : memref<2x32xf32, #tpu.memory_space<vmem>>, vector<2x32xf32>
    tpu.vector_store %arg12[%c0_82, %c0_83], %321 {strides = array<i32>} : memref<2x32xf32, #tpu.memory_space<vmem>>, vector<2x32xf32>,
    return
  }
  func.func @transform_0(%arg0: i32) -> (i32, i32, i32) {
    %c0_i32 = arith.constant 0 : i32
    %c0_i32_0 = arith.constant 0 : i32
    %c0_i32_1 = arith.constant 0 : i32
    %c0_i32_2 = arith.constant 0 : i32
    return %c0_i32, %c0_i32_0, %c0_i32_1 : i32, i32, i32
  }
  func.func @transform_1(%arg0: i32) -> (i32, i32, i32) {
    %c0_i32 = arith.constant 0 : i32
    %c0_i32_0 = arith.constant 0 : i32
    %c0_i32_1 = arith.constant 0 : i32
    %c0_i32_2 = arith.constant 0 : i32
    return %c0_i32, %c0_i32_0, %c0_i32_1 : i32, i32, i32
  }
  func.func @transform_2(%arg0: i32) -> (i32, i32) {
    %c0_i32 = arith.constant 0 : i32
    %c0_i32_0 = arith.constant 0 : i32
    %c0_i32_1 = arith.constant 0 : i32
    return %c0_i32, %c0_i32_0 : i32, i32
  }
  func.func @transform_3(%arg0: i32) -> (i32, i32) {
    %c0_i32 = arith.constant 0 : i32
    %c0_i32_0 = arith.constant 0 : i32
    %c0_i32_1 = arith.constant 0 : i32
    return %c0_i32, %c0_i32_0 : i32, i32
  }
  func.func @transform_4(%arg0: i32) -> (i32, i32) {
    %c0_i32 = arith.constant 0 : i32
    %c0_i32_0 = arith.constant 0 : i32
    %c0_i32_1 = arith.constant 0 : i32
    return %c0_i32, %c0_i32_0 : i32, i32
  }
  func.func @transform_5(%arg0: i32) -> (i32, i32) {
    %c0_i32 = arith.constant 0 : i32
    %c0_i32_0 = arith.constant 0 : i32
    %c0_i32_1 = arith.constant 0 : i32
    return %c0_i32, %c0_i32_0 : i32, i32
  }
  func.func @transform_6(%arg0: i32) -> (i32, i32) {
    %c0_i32 = arith.constant 0 : i32
    %c0_i32_0 = arith.constant 0 : i32
    %c0_i32_1 = arith.constant 0 : i32
    return %c0_i32, %c0_i32_0 : i32, i32
  }
  func.func @transform_7(%arg0: i32) -> (i32, i32) {
    %c0_i32 = arith.constant 0 : i32
    %c0_i32_0 = arith.constant 0 : i32
    %c0_i32_1 = arith.constant 0 : i32
    return %c0_i32, %c0_i32_0 : i32, i32
  }
  func.func @transform_8(%arg0: i32) -> (i32, i32) {
    %c0_i32 = arith.constant 0 : i32
    %c0_i32_0 = arith.constant 0 : i32
    %c0_i32_1 = arith.constant 0 : i32
    return %c0_i32, %c0_i32_0 : i32, i32
  }
  func.func @transform_9(%arg0: i32) -> (i32, i32) {
    %c0_i32 = arith.constant 0 : i32
    %c0_i32_0 = arith.constant 0 : i32
    %c0_i32_1 = arith.constant 0 : i32
    return %c0_i32, %c0_i32_0 : i32, i32
  }
  func.func @transform_10(%arg0: i32) -> (i32, i32) {
    %c0_i32 = arith.constant 0 : i32
    %c0_i32_0 = arith.constant 0 : i32
    %c0_i32_1 = arith.constant 0 : i32
    return %c0_i32, %c0_i32_0 : i32, i32
  }
  func.func @transform_11(%arg0: i32) -> (i32, i32) {
    %c0_i32 = arith.constant 0 : i32
    %c0_i32_0 = arith.constant 0 : i32
    %c0_i32_1 = arith.constant 0 : i32
    return %c0_i32, %c0_i32_0 : i32, i32
  }
}

</mosaic_0001>

<llo_original>
// kernel: multimodal_lstm_forward.1
$region0: #{multimodal_lstm_forward.1}
  #allocation0 [shape = 'u32[]', space=smem, size = 0x4, offset = 0x4, fixed_abs, tag = 'smem constant byte address 0x4 - core index']
  #allocation1 [shape = 'u32[144,128]{1,0:T(1,128)}', space=vmem, size = 0x12000, scoped, tag = 'internal scratch']
  %s0 = inlined_call_operand.vmem [shape: f32[8,2,128], index: 0, kind: input, shape index: {}]
  %s1 = inlined_call_operand.vmem [shape: f32[6,2,128], index: 1, kind: input, shape index: {}]
  %s2 = inlined_call_operand.vmem [shape: f32[2,32], index: 2, kind: input, shape index: {}]
  %s3 = inlined_call_operand.vmem [shape: f32[2,32], index: 3, kind: input, shape index: {}]
  %s4 = inlined_call_operand.vmem [shape: s32[2,1], index: 4, kind: input, shape index: {}]
  %s5 = inlined_call_operand.vmem [shape: f32[32,128], index: 5, kind: input, shape index: {}]
  %s6 = inlined_call_operand.vmem [shape: f32[32,128], index: 6, kind: input, shape index: {}]
  %s7 = inlined_call_operand.vmem [shape: f32[32,128], index: 7, kind: input, shape index: {}]
  %s8 = inlined_call_operand.vmem [shape: f32[32,128], index: 8, kind: input, shape index: {}]
  %s9 = inlined_call_operand.vmem [shape: f32[1,128], index: 9, kind: input, shape index: {}]
  %s10 = inlined_call_operand.hbm [shape: f32[2,128], index: 10, kind: output, shape index: {0}]
  %s11 = inlined_call_operand.hbm [shape: f32[2,32], index: 11, kind: output, shape index: {1}]
  %12 = xla_tuple %s10, %s11
  %s13 = sld [smem:[#allocation0]]
  $region58: #{multimodal_lstm_forward.1} parent=0
    _
  %s15 = ssub.s32 1, %s13
  %s16 = scalar_select 0, %s15, %s13
  $region1: #{multimodal_lstm_forward.1} parent=0
    #allocation2 [shape = 'u8[1024]{0}', space=vmem, size = 0x400, scoped, tag = 'output window, operand 0, single buffered']
    #allocation3 [shape = 's32[1]{0}', space=sflag, size = 0x4, scoped, tag = 'scoped memory for multimodal_lstm_forward.1']
    #allocation4 [shape = 'u8[1024]{0}', space=vmem, size = 0x400, scoped, tag = 'output window, operand 1, single buffered']
    #allocation5 [shape = 's32[1]{0}', space=sflag, size = 0x4, scoped, tag = 'scoped memory for multimodal_lstm_forward.1']
    %17 = vsyncpa [#allocation3], 0
    %18 = vsyncpa [#allocation5], 0
    // Predicated region
    $region2: #{multimodal_lstm_forward.1} parent=1 // pred_check
      _
    $region3: #{multimodal_lstm_forward.1} parent=1 // pred_check_branch
      %20 = sbr.rel (0) target = $region5
    $region4: #{multimodal_lstm_forward.1} parent=1 // pred_region
      _
    $region5: #{multimodal_lstm_forward.1} parent=1 // pred_fallthru
      _
    // Predicated region
    $region6: #{multimodal_lstm_forward.1} parent=1 // pred_check
      _
    $region7: #{multimodal_lstm_forward.1} parent=1 // pred_check_branch
      %22 = sbr.rel (0) target = $region9
    $region8: #{multimodal_lstm_forward.1} parent=1 // pred_region
      _
    $region9: #{multimodal_lstm_forward.1} parent=1 // pred_fallthru
      _
    // Predicated region
    $region10: #{multimodal_lstm_forward.1} parent=1 // pred_check
      _
    $region11: #{multimodal_lstm_forward.1} parent=1 // pred_check_branch
      %24 = sbr.rel (0) target = $region13
    $region12: #{multimodal_lstm_forward.1} parent=1 // pred_region
      _
    $region13: #{multimodal_lstm_forward.1} parent=1 // pred_fallthru
      _
    // Predicated region
    $region14: #{multimodal_lstm_forward.1} parent=1 // pred_check
      _
    $region15: #{multimodal_lstm_forward.1} parent=1 // pred_check_branch
      %26 = sbr.rel (0) target = $region17
    $region16: #{multimodal_lstm_forward.1} parent=1 // pred_region
      _
    $region17: #{multimodal_lstm_forward.1} parent=1 // pred_fallthru
      _
    // Predicated region
    $region18: #{multimodal_lstm_forward.1} parent=1 // pred_check
      _
    $region19: #{multimodal_lstm_forward.1} parent=1 // pred_check_branch
      %28 = sbr.rel (0) target = $region21
    $region20: #{multimodal_lstm_forward.1} parent=1 // pred_region
      _
    $region21: #{multimodal_lstm_forward.1} parent=1 // pred_fallthru
      _
    // Predicated region
    $region22: #{multimodal_lstm_forward.1} parent=1 // pred_check
      _
    $region23: #{multimodal_lstm_forward.1} parent=1 // pred_check_branch
      %30 = sbr.rel (0) target = $region25
    $region24: #{multimodal_lstm_forward.1} parent=1 // pred_region
      _
    $region25: #{multimodal_lstm_forward.1} parent=1 // pred_fallthru
      _
    // Predicated region
    $region26: #{multimodal_lstm_forward.1} parent=1 // pred_check
      _
    $region27: #{multimodal_lstm_forward.1} parent=1 // pred_check_branch
      %32 = sbr.rel (0) target = $region29
    $region28: #{multimodal_lstm_forward.1} parent=1 // pred_region
      _
    $region29: #{multimodal_lstm_forward.1} parent=1 // pred_fallthru
      _
    // Predicated region
    $region30: #{multimodal_lstm_forward.1} parent=1 // pred_check
      _
    $region31: #{multimodal_lstm_forward.1} parent=1 // pred_check_branch
      %34 = sbr.rel (0) target = $region33
    $region32: #{multimodal_lstm_forward.1} parent=1 // pred_region
      _
    $region33: #{multimodal_lstm_forward.1} parent=1 // pred_fallthru
      _
    // Predicated region
    $region34: #{multimodal_lstm_forward.1} parent=1 // pred_check
      _
    $region35: #{multimodal_lstm_forward.1} parent=1 // pred_check_branch
      %36 = sbr.rel (0) target = $region37
    $region36: #{multimodal_lstm_forward.1} parent=1 // pred_region
      _
    $region37: #{multimodal_lstm_forward.1} parent=1 // pred_fallthru
      _
    // Predicated region
    $region38: #{multimodal_lstm_forward.1} parent=1 // pred_check
      _
    $region39: #{multimodal_lstm_forward.1} parent=1 // pred_check_branch
      %38 = sbr.rel (0) target = $region41
    $region40: #{multimodal_lstm_forward.1} parent=1 // pred_region
      _
    $region41: #{multimodal_lstm_forward.1} parent=1 // pred_fallthru
      _
    %v39 = vld [vmem:[%s5] sm:$0xff]
    %v40 = vld [vmem:[%s5 + $0x8] sm:$0xff]
    %v41 = vld [vmem:[%s5 + $0x10] sm:$0xff]
    %v42 = vld [vmem:[%s5 + $0x18] sm:$0xff]
    %v43 = vld [vmem:[%s6] sm:$0xff]
    %v44 = vld [vmem:[%s6 + $0x8] sm:$0xff]
    %v45 = vld [vmem:[%s6 + $0x10] sm:$0xff]
    %v46 = vld [vmem:[%s6 + $0x18] sm:$0xff]
    %v47 = vld [vmem:[%s4] sm:$0x3]
    %v48 = vlaneseq
    %v49 = vand.u32 %v48, 127
    %vm50 = vcmp.ge.s32.totalorder %v49, 64
    %vm51 = vcmp.lt.s32.totalorder %v49, 96
    %vm52 = vmand %vm50, %vm51
    %v53 = vld [vmem:[%s2] sm:$0x3]
    %v54 = vld [vmem:[%s3] sm:$0x3]
    %v55 = vld [vmem:[%s0] sm:$0x3]
    %vm56 = vcmask 261120
    %v58 = vsel %vm56, %v53, 0
    %60 = vmatprep.subr.mxu0 0.0
    %61 = vmatpush1.msra.mxu0 0.0
    %62 = vmatprep.subr.mxu0 0.0
    %63 = vmatpush1.msra.mxu0 0.0
    %64 = vmatprep.subr.mxu0 0.0
    %65 = vmatpush1.msra.mxu0 0.0
    %66 = vmatprep.subr.mxu0 0.0
    %67 = vmatpush1.msra.mxu0 0.0
    %68 = vmatprep.subr.mxu0 0.0
    %69 = vmatpush1.msra.mxu0 0.0
    %70 = vmatprep.subr.mxu0 0.0
    %71 = vmatpush1.msra.mxu0 0.0
    %72 = vmatprep.subr.mxu0 0.0
    %73 = vmatpush1.msra.mxu0 0.0
    %74 = vmatprep.subr.mxu0 0.0
    %75 = vmatpush1.msra.mxu0 0.0
    %76 = vmatprep.subr.mxu0 0.0
    %77 = vmatpush1.msra.mxu0 0.0
    %78 = vmatprep.subr.mxu0 0.0
    %79 = vmatpush1.msra.mxu0 0.0
    %80 = vmatprep.subr.mxu0 0.0
    %81 = vmatpush1.msra.mxu0 0.0
    %82 = vmatprep.subr.mxu0 0.0
    %83 = vmatpush1.msra.mxu0 0.0
    %84 = vmatprep.subr.mxu0 0.0
    %85 = vmatpush1.msra.mxu0 %v42
    %86 = vmatprep.subr.mxu0 0.0
    %87 = vmatpush1.msra.mxu0 %v41
    %88 = vmatprep.subr.mxu0 0.0
    %89 = vmatpush1.msra.mxu0 %v40
    %90 = vmatprep.subr.mxu0 0.0
    %91 = vmatpush1.msra.mxu0 %v39
    %92 = vmatprep.subr.mxu0 0.0
    %93 = vmatpush2.msra.mxu0 0.0
    %94 = vmatprep.subr.mxu0 0.0
    %95 = vmatpush2.msra.mxu0 0.0
    %96 = vmatprep.subr.mxu0 0.0
    %97 = vmatpush2.msra.mxu0 0.0
    %98 = vmatprep.subr.mxu0 0.0
    %99 = vmatpush2.msra.mxu0 0.0
    %100 = vmatprep.subr.mxu0 0.0
    %101 = vmatpush2.msra.mxu0 0.0
    %102 = vmatprep.subr.mxu0 0.0
    %103 = vmatpush2.msra.mxu0 0.0
    %104 = vmatprep.subr.mxu0 0.0
    %105 = vmatpush2.msra.mxu0 0.0
    %106 = vmatprep.subr.mxu0 0.0
    %107 = vmatpush2.msra.mxu0 0.0
    %108 = vmatprep.subr.mxu0 0.0
    %109 = vmatpush2.msra.mxu0 0.0
    %110 = vmatprep.subr.mxu0 0.0
    %111 = vmatpush2.msra.mxu0 0.0
    %112 = vmatprep.subr.mxu0 0.0
    %113 = vmatpush2.msra.mxu0 0.0
    %114 = vmatprep.subr.mxu0 0.0
    %115 = vmatpush2.msra.mxu0 0.0
    %116 = vmatprep.subr.mxu0 0.0
    %117 = vmatpush2.msra.mxu0 0.0
    %118 = vmatprep.subr.mxu0 0.0
    %119 = vmatpush2.msra.mxu0 0.0
    %120 = vmatprep.subr.mxu0 0.0
    %121 = vmatpush2.msra.mxu0 0.0
    %122 = vmatprep.subr.mxu0 0.0
    %123 = vmatpush2.msra.mxu0 0.0
    %124 = vmatprep.mubr.f32.mxu0 0.0
    %125 = vmatmul.mubr.f32.gmra.mxu0 %v58
    %v126 = vpop.f32.mrf.mxu0
    %v127 = vadd.f32 0.0, %v126
    %v128 = vpop.f32.mrf.mxu0
    %129 = vdwg.mxu0
    %v130 = vadd.f32 %v55, %v127
    %v131 = vtanh.pop %v130
    %v132 = vxor.u32 %v130, 2147483648
    %v133 = vmul.f32 %v132, 1.442695
    %v134 = vpow.pop %v133
    %v135 = vadd.f32 %v134, 1.0
    %v136 = vrcp.pop %v135
    %v137 = vmul.f32 1.0, %v136
    %v138 = vsel %vm52, %v131, %v137
    %140 = vrot.lane.b32.xlu0 %v54, 32
    %v141 = vpop.permute.xlu0 %140
    %v143 = vmul.f32 %v138, %v141
    %145 = vrot.lane.b32.xlu0 %v138, 64
    %v146 = vpop.permute.xlu0 %145
    %v148 = vmul.f32 %v138, %v146
    %150 = vrot.lane.b32.xlu0 %v148, 32
    %v151 = vpop.permute.xlu0 %150
    %v153 = vadd.f32 %v143, %v151
    %v154 = vtanh.pop %v153
    %156 = vrot.lane.b32.xlu0 %v154, 64
    %v157 = vpop.permute.xlu0 %156
    %v159 = vmul.f32 %v138, %v157
    %v160 = vld [vmem:[%s1] sm:$0x3]
    %v162 = vsel %vm56, 0.0, 0
    %164 = vmatprep.subr.mxu0 0.0
    %165 = vmatpush1.msra.mxu0 0.0
    %166 = vmatprep.subr.mxu0 0.0
    %167 = vmatpush1.msra.mxu0 0.0
    %168 = vmatprep.subr.mxu0 0.0
    %169 = vmatpush1.msra.mxu0 0.0
    %170 = vmatprep.subr.mxu0 0.0
    %171 = vmatpush1.msra.mxu0 0.0
    %172 = vmatprep.subr.mxu0 0.0
    %173 = vmatpush1.msra.mxu0 0.0
    %174 = vmatprep.subr.mxu0 0.0
    %175 = vmatpush1.msra.mxu0 0.0
    %176 = vmatprep.subr.mxu0 0.0
    %177 = vmatpush1.msra.mxu0 0.0
    %178 = vmatprep.subr.mxu0 0.0
    %179 = vmatpush1.msra.mxu0 0.0
    %180 = vmatprep.subr.mxu0 0.0
    %181 = vmatpush1.msra.mxu0 0.0
    %182 = vmatprep.subr.mxu0 0.0
    %183 = vmatpush1.msra.mxu0 0.0
    %184 = vmatprep.subr.mxu0 0.0
    %185 = vmatpush1.msra.mxu0 0.0
    %186 = vmatprep.subr.mxu0 0.0
    %187 = vmatpush1.msra.mxu0 0.0
    %188 = vmatprep.subr.mxu0 0.0
    %189 = vmatpush1.msra.mxu0 %v46
    %190 = vmatprep.subr.mxu0 0.0
    %191 = vmatpush1.msra.mxu0 %v45
    %192 = vmatprep.subr.mxu0 0.0
    %193 = vmatpush1.msra.mxu0 %v44
    %194 = vmatprep.subr.mxu0 0.0
    %195 = vmatpush1.msra.mxu0 %v43
    %196 = vmatprep.subr.mxu0 0.0
    %197 = vmatpush2.msra.mxu0 0.0
    %198 = vmatprep.subr.mxu0 0.0
    %199 = vmatpush2.msra.mxu0 0.0
    %200 = vmatprep.subr.mxu0 0.0
    %201 = vmatpush2.msra.mxu0 0.0
    %202 = vmatprep.subr.mxu0 0.0
    %203 = vmatpush2.msra.mxu0 0.0
    %204 = vmatprep.subr.mxu0 0.0
    %205 = vmatpush2.msra.mxu0 0.0
    %206 = vmatprep.subr.mxu0 0.0
    %207 = vmatpush2.msra.mxu0 0.0
    %208 = vmatprep.subr.mxu0 0.0
    %209 = vmatpush2.msra.mxu0 0.0
    %210 = vmatprep.subr.mxu0 0.0
    %211 = vmatpush2.msra.mxu0 0.0
    %212 = vmatprep.subr.mxu0 0.0
    %213 = vmatpush2.msra.mxu0 0.0
    %214 = vmatprep.subr.mxu0 0.0
    %215 = vmatpush2.msra.mxu0 0.0
    %216 = vmatprep.subr.mxu0 0.0
    %217 = vmatpush2.msra.mxu0 0.0
    %218 = vmatprep.subr.mxu0 0.0
    %219 = vmatpush2.msra.mxu0 0.0
    %220 = vmatprep.subr.mxu0 0.0
    %221 = vmatpush2.msra.mxu0 0.0
    %222 = vmatprep.subr.mxu0 0.0
    %223 = vmatpush2.msra.mxu0 0.0
    %224 = vmatprep.subr.mxu0 0.0
    %225 = vmatpush2.msra.mxu0 0.0
    %226 = vmatprep.subr.mxu0 0.0
    %227 = vmatpush2.msra.mxu0 0.0
    %228 = vmatprep.mubr.f32.mxu0 0.0
    %229 = vmatmul.mubr.f32.gmra.mxu0 %v162
    %v230 = vpop.f32.mrf.mxu0
    %v231 = vadd.f32 0.0, %v230
    %v232 = vpop.f32.mrf.mxu0
    %233 = vdwg.mxu0
    %v234 = vadd.f32 %v160, %v231
    %v235 = vtanh.pop %v234
    %v236 = vxor.u32 %v234, 2147483648
    %v237 = vmul.f32 %v236, 1.442695
    %v238 = vpow.pop %v237
    %v239 = vadd.f32 %v238, 1.0
    %v240 = vrcp.pop %v239
    %v241 = vmul.f32 1.0, %v240
    %v242 = vsel %vm52, %v235, %v241
    %v243 = vmul.f32 %v242, 0.0
    %245 = vrot.lane.b32.xlu0 %v242, 64
    %v246 = vpop.permute.xlu0 %245
    %v248 = vmul.f32 %v242, %v246
    %250 = vrot.lane.b32.xlu0 %v248, 32
    %v251 = vpop.permute.xlu0 %250
    %v253 = vadd.f32 %v243, %v251
    %v254 = vtanh.pop %v253
    %256 = vrot.lane.b32.xlu0 %v254, 64
    %v257 = vpop.permute.xlu0 %256
    %v259 = vmul.f32 %v242, %v257
    %vm260 = vcmp.eq.s32.totalorder %v47, 1
    %v261 = vsel %vm260, 1, 0
    %262 = vset.pattern.permute.xlu0 0
    %263 = vperm.xlu0 %262, %v261
    %v264 = vpop.permute.xlu0 %263
    %vm265 = vcmp.eq.s32.totalorder %v264, 1
    %v266 = vsel %vm265, %v259, 0.0
    %s267 = scalar_lea.vmem %s0, 2
    %v268 = vld [vmem:[%s267] sm:$0x3]
    %270 = vrot.lane.b32.xlu0 %v159, 32
    %v271 = vpop.permute.xlu0 %270
    %v272 = vsel %vm56, %v271, 0
    %274 = vmatprep.subr.mxu0 0.0
    %275 = vmatpush1.msra.mxu0 0.0
    %276 = vmatprep.subr.mxu0 0.0
    %277 = vmatpush1.msra.mxu0 0.0
    %278 = vmatprep.subr.mxu0 0.0
    %279 = vmatpush1.msra.mxu0 0.0
    %280 = vmatprep.subr.mxu0 0.0
    %281 = vmatpush1.msra.mxu0 0.0
    %282 = vmatprep.subr.mxu0 0.0
    %283 = vmatpush1.msra.mxu0 0.0
    %284 = vmatprep.subr.mxu0 0.0
    %285 = vmatpush1.msra.mxu0 0.0
    %286 = vmatprep.subr.mxu0 0.0
    %287 = vmatpush1.msra.mxu0 0.0
    %288 = vmatprep.subr.mxu0 0.0
    %289 = vmatpush1.msra.mxu0 0.0
    %290 = vmatprep.subr.mxu0 0.0
    %291 = vmatpush1.msra.mxu0 0.0
    %292 = vmatprep.subr.mxu0 0.0
    %293 = vmatpush1.msra.mxu0 0.0
    %294 = vmatprep.subr.mxu0 0.0
    %295 = vmatpush1.msra.mxu0 0.0
    %296 = vmatprep.subr.mxu0 0.0
    %297 = vmatpush1.msra.mxu0 0.0
    %298 = vmatprep.subr.mxu0 0.0
    %299 = vmatpush1.msra.mxu0 %v42
    %300 = vmatprep.subr.mxu0 0.0
    %301 = vmatpush1.msra.mxu0 %v41
    %302 = vmatprep.subr.mxu0 0.0
    %303 = vmatpush1.msra.mxu0 %v40
    %304 = vmatprep.subr.mxu0 0.0
    %305 = vmatpush1.msra.mxu0 %v39
    %306 = vmatprep.subr.mxu0 0.0
    %307 = vmatpush2.msra.mxu0 0.0
    %308 = vmatprep.subr.mxu0 0.0
    %309 = vmatpush2.msra.mxu0 0.0
    %310 = vmatprep.subr.mxu0 0.0
    %311 = vmatpush2.msra.mxu0 0.0
    %312 = vmatprep.subr.mxu0 0.0
    %313 = vmatpush2.msra.mxu0 0.0
    %314 = vmatprep.subr.mxu0 0.0
    %315 = vmatpush2.msra.mxu0 0.0
    %316 = vmatprep.subr.mxu0 0.0
    %317 = vmatpush2.msra.mxu0 0.0
    %318 = vmatprep.subr.mxu0 0.0
    %319 = vmatpush2.msra.mxu0 0.0
    %320 = vmatprep.subr.mxu0 0.0
    %321 = vmatpush2.msra.mxu0 0.0
    %322 = vmatprep.subr.mxu0 0.0
    %323 = vmatpush2.msra.mxu0 0.0
    %324 = vmatprep.subr.mxu0 0.0
    %325 = vmatpush2.msra.mxu0 0.0
    %326 = vmatprep.subr.mxu0 0.0
    %327 = vmatpush2.msra.mxu0 0.0
    %328 = vmatprep.subr.mxu0 0.0
    %329 = vmatpush2.msra.mxu0 0.0
    %330 = vmatprep.subr.mxu0 0.0
    %331 = vmatpush2.msra.mxu0 0.0
    %332 = vmatprep.subr.mxu0 0.0
    %333 = vmatpush2.msra.mxu0 0.0
    %334 = vmatprep.subr.mxu0 0.0
    %335 = vmatpush2.msra.mxu0 0.0
    %336 = vmatprep.subr.mxu0 0.0
    %337 = vmatpush2.msra.mxu0 0.0
    %338 = vmatprep.mubr.f32.mxu0 0.0
    %339 = vmatmul.mubr.f32.gmra.mxu0 %v272
    %v340 = vpop.f32.mrf.mxu0
    %v341 = vadd.f32 0.0, %v340
    %v342 = vpop.f32.mrf.mxu0
    %343 = vdwg.mxu0
    %v344 = vadd.f32 %v268, %v341
    %v345 = vtanh.pop %v344
    %v346 = vxor.u32 %v344, 2147483648
    %v347 = vmul.f32 %v346, 1.442695
    %v348 = vpow.pop %v347
    %v349 = vadd.f32 %v348, 1.0
    %v350 = vrcp.pop %v349
    %v351 = vmul.f32 1.0, %v350
    %v352 = vsel %vm52, %v345, %v351
    %v353 = vmul.f32 %v352, %v153
    %355 = vrot.lane.b32.xlu0 %v352, 64
    %v356 = vpop.permute.xlu0 %355
    %v358 = vmul.f32 %v352, %v356
    %360 = vrot.lane.b32.xlu0 %v358, 32
    %v361 = vpop.permute.xlu0 %360
    %v363 = vadd.f32 %v353, %v361
    %v364 = vtanh.pop %v363
    %366 = vrot.lane.b32.xlu0 %v364, 64
    %v367 = vpop.permute.xlu0 %366
    %v369 = vmul.f32 %v352, %v367
    %s370 = scalar_lea.vmem %s1, 2
    %v371 = vld [vmem:[%s370] sm:$0x3]
    %373 = vrot.lane.b32.xlu0 %v259, 32
    %v374 = vpop.permute.xlu0 %373
    %v375 = vsel %vm56, %v374, 0
    %377 = vmatprep.subr.mxu0 0.0
    %378 = vmatpush1.msra.mxu0 0.0
    %379 = vmatprep.subr.mxu0 0.0
    %380 = vmatpush1.msra.mxu0 0.0
    %381 = vmatprep.subr.mxu0 0.0
    %382 = vmatpush1.msra.mxu0 0.0
    %383 = vmatprep.subr.mxu0 0.0
    %384 = vmatpush1.msra.mxu0 0.0
    %385 = vmatprep.subr.mxu0 0.0
    %386 = vmatpush1.msra.mxu0 0.0
    %387 = vmatprep.subr.mxu0 0.0
    %388 = vmatpush1.msra.mxu0 0.0
    %389 = vmatprep.subr.mxu0 0.0
    %390 = vmatpush1.msra.mxu0 0.0
    %391 = vmatprep.subr.mxu0 0.0
    %392 = vmatpush1.msra.mxu0 0.0
    %393 = vmatprep.subr.mxu0 0.0
    %394 = vmatpush1.msra.mxu0 0.0
    %395 = vmatprep.subr.mxu0 0.0
    %396 = vmatpush1.msra.mxu0 0.0
    %397 = vmatprep.subr.mxu0 0.0
    %398 = vmatpush1.msra.mxu0 0.0
    %399 = vmatprep.subr.mxu0 0.0
    %400 = vmatpush1.msra.mxu0 0.0
    %401 = vmatprep.subr.mxu0 0.0
    %402 = vmatpush1.msra.mxu0 %v46
    %403 = vmatprep.subr.mxu0 0.0
    %404 = vmatpush1.msra.mxu0 %v45
    %405 = vmatprep.subr.mxu0 0.0
    %406 = vmatpush1.msra.mxu0 %v44
    %407 = vmatprep.subr.mxu0 0.0
    %408 = vmatpush1.msra.mxu0 %v43
    %409 = vmatprep.subr.mxu0 0.0
    %410 = vmatpush2.msra.mxu0 0.0
    %411 = vmatprep.subr.mxu0 0.0
    %412 = vmatpush2.msra.mxu0 0.0
    %413 = vmatprep.subr.mxu0 0.0
    %414 = vmatpush2.msra.mxu0 0.0
    %415 = vmatprep.subr.mxu0 0.0
    %416 = vmatpush2.msra.mxu0 0.0
    %417 = vmatprep.subr.mxu0 0.0
    %418 = vmatpush2.msra.mxu0 0.0
    %419 = vmatprep.subr.mxu0 0.0
    %420 = vmatpush2.msra.mxu0 0.0
    %421 = vmatprep.subr.mxu0 0.0
    %422 = vmatpush2.msra.mxu0 0.0
    %423 = vmatprep.subr.mxu0 0.0
    %424 = vmatpush2.msra.mxu0 0.0
    %425 = vmatprep.subr.mxu0 0.0
    %426 = vmatpush2.msra.mxu0 0.0
    %427 = vmatprep.subr.mxu0 0.0
    %428 = vmatpush2.msra.mxu0 0.0
    %429 = vmatprep.subr.mxu0 0.0
    %430 = vmatpush2.msra.mxu0 0.0
    %431 = vmatprep.subr.mxu0 0.0
    %432 = vmatpush2.msra.mxu0 0.0
    %433 = vmatprep.subr.mxu0 0.0
    %434 = vmatpush2.msra.mxu0 0.0
    %435 = vmatprep.subr.mxu0 0.0
    %436 = vmatpush2.msra.mxu0 0.0
    %437 = vmatprep.subr.mxu0 0.0
    %438 = vmatpush2.msra.mxu0 0.0
    %439 = vmatprep.subr.mxu0 0.0
    %440 = vmatpush2.msra.mxu0 0.0
    %441 = vmatprep.mubr.f32.mxu0 0.0
    %442 = vmatmul.mubr.f32.gmra.mxu0 %v375
    %v443 = vpop.f32.mrf.mxu0
    %v444 = vadd.f32 0.0, %v443
    %v445 = vpop.f32.mrf.mxu0
    %446 = vdwg.mxu0
    %v447 = vadd.f32 %v371, %v444
    %v448 = vtanh.pop %v447
    %v449 = vxor.u32 %v447, 2147483648
    %v450 = vmul.f32 %v449, 1.442695
    %v451 = vpow.pop %v450
    %v452 = vadd.f32 %v451, 1.0
    %v453 = vrcp.pop %v452
    %v454 = vmul.f32 1.0, %v453
    %v455 = vsel %vm52, %v448, %v454
    %v456 = vmul.f32 %v455, %v253
    %458 = vrot.lane.b32.xlu0 %v455, 64
    %v459 = vpop.permute.xlu0 %458
    %v461 = vmul.f32 %v455, %v459
    %463 = vrot.lane.b32.xlu0 %v461, 32
    %v464 = vpop.permute.xlu0 %463
    %v466 = vadd.f32 %v456, %v464
    %v467 = vtanh.pop %v466
    %469 = vrot.lane.b32.xlu0 %v467, 64
    %v470 = vpop.permute.xlu0 %469
    %v472 = vmul.f32 %v455, %v470
    %vm473 = vcmp.eq.s32.totalorder %v47, 2
    %v474 = vsel %vm473, 1, 0
    %475 = vset.pattern.permute.xlu0 0
    %476 = vperm.xlu0 %475, %v474
    %v477 = vpop.permute.xlu0 %476
    %vm478 = vcmp.eq.s32.totalorder %v477, 1
    %v479 = vsel %vm478, %v472, %v266
    %s480 = scalar_lea.vmem %s0, 4
    %v481 = vld [vmem:[%s480] sm:$0x3]
    %483 = vrot.lane.b32.xlu0 %v369, 32
    %v484 = vpop.permute.xlu0 %483
    %v485 = vsel %vm56, %v484, 0
    %487 = vmatprep.subr.mxu0 0.0
    %488 = vmatpush1.msra.mxu0 0.0
    %489 = vmatprep.subr.mxu0 0.0
    %490 = vmatpush1.msra.mxu0 0.0
    %491 = vmatprep.subr.mxu0 0.0
    %492 = vmatpush1.msra.mxu0 0.0
    %493 = vmatprep.subr.mxu0 0.0
    %494 = vmatpush1.msra.mxu0 0.0
    %495 = vmatprep.subr.mxu0 0.0
    %496 = vmatpush1.msra.mxu0 0.0
    %497 = vmatprep.subr.mxu0 0.0
    %498 = vmatpush1.msra.mxu0 0.0
    %499 = vmatprep.subr.mxu0 0.0
    %500 = vmatpush1.msra.mxu0 0.0
    %501 = vmatprep.subr.mxu0 0.0
    %502 = vmatpush1.msra.mxu0 0.0
    %503 = vmatprep.subr.mxu0 0.0
    %504 = vmatpush1.msra.mxu0 0.0
    %505 = vmatprep.subr.mxu0 0.0
    %506 = vmatpush1.msra.mxu0 0.0
    %507 = vmatprep.subr.mxu0 0.0
    %508 = vmatpush1.msra.mxu0 0.0
    %509 = vmatprep.subr.mxu0 0.0
    %510 = vmatpush1.msra.mxu0 0.0
    %511 = vmatprep.subr.mxu0 0.0
    %512 = vmatpush1.msra.mxu0 %v42
    %513 = vmatprep.subr.mxu0 0.0
    %514 = vmatpush1.msra.mxu0 %v41
    %515 = vmatprep.subr.mxu0 0.0
    %516 = vmatpush1.msra.mxu0 %v40
    %517 = vmatprep.subr.mxu0 0.0
    %518 = vmatpush1.msra.mxu0 %v39
    %519 = vmatprep.subr.mxu0 0.0
    %520 = vmatpush2.msra.mxu0 0.0
    %521 = vmatprep.subr.mxu0 0.0
    %522 = vmatpush2.msra.mxu0 0.0
    %523 = vmatprep.subr.mxu0 0.0
    %524 = vmatpush2.msra.mxu0 0.0
    %525 = vmatprep.subr.mxu0 0.0
    %526 = vmatpush2.msra.mxu0 0.0
    %527 = vmatprep.subr.mxu0 0.0
    %528 = vmatpush2.msra.mxu0 0.0
    %529 = vmatprep.subr.mxu0 0.0
    %530 = vmatpush2.msra.mxu0 0.0
    %531 = vmatprep.subr.mxu0 0.0
    %532 = vmatpush2.msra.mxu0 0.0
    %533 = vmatprep.subr.mxu0 0.0
    %534 = vmatpush2.msra.mxu0 0.0
    %535 = vmatprep.subr.mxu0 0.0
    %536 = vmatpush2.msra.mxu0 0.0
    %537 = vmatprep.subr.mxu0 0.0
    %538 = vmatpush2.msra.mxu0 0.0
    %539 = vmatprep.subr.mxu0 0.0
    %540 = vmatpush2.msra.mxu0 0.0
    %541 = vmatprep.subr.mxu0 0.0
    %542 = vmatpush2.msra.mxu0 0.0
    %543 = vmatprep.subr.mxu0 0.0
    %544 = vmatpush2.msra.mxu0 0.0
    %545 = vmatprep.subr.mxu0 0.0
    %546 = vmatpush2.msra.mxu0 0.0
    %547 = vmatprep.subr.mxu0 0.0
    %548 = vmatpush2.msra.mxu0 0.0
    %549 = vmatprep.subr.mxu0 0.0
    %550 = vmatpush2.msra.mxu0 0.0
    %551 = vmatprep.mubr.f32.mxu0 0.0
    %552 = vmatmul.mubr.f32.gmra.mxu0 %v485
    %v553 = vpop.f32.mrf.mxu0
    %v554 = vadd.f32 0.0, %v553
    %v555 = vpop.f32.mrf.mxu0
    %556 = vdwg.mxu0
    %v557 = vadd.f32 %v481, %v554
    %v558 = vtanh.pop %v557
    %v559 = vxor.u32 %v557, 2147483648
    %v560 = vmul.f32 %v559, 1.442695
    %v561 = vpow.pop %v560
    %v562 = vadd.f32 %v561, 1.0
    %v563 = vrcp.pop %v562
    %v564 = vmul.f32 1.0, %v563
    %v565 = vsel %vm52, %v558, %v564
    %v566 = vmul.f32 %v565, %v363
    %568 = vrot.lane.b32.xlu0 %v565, 64
    %v569 = vpop.permute.xlu0 %568
    %v571 = vmul.f32 %v565, %v569
    %573 = vrot.lane.b32.xlu0 %v571, 32
    %v574 = vpop.permute.xlu0 %573
    %v576 = vadd.f32 %v566, %v574
    %v577 = vtanh.pop %v576
    %579 = vrot.lane.b32.xlu0 %v577, 64
    %v580 = vpop.permute.xlu0 %579
    %v582 = vmul.f32 %v565, %v580
    %s583 = scalar_lea.vmem %s1, 4
    %v584 = vld [vmem:[%s583] sm:$0x3]
    %586 = vrot.lane.b32.xlu0 %v472, 32
    %v587 = vpop.permute.xlu0 %586
    %v588 = vsel %vm56, %v587, 0
    %590 = vmatprep.subr.mxu0 0.0
    %591 = vmatpush1.msra.mxu0 0.0
    %592 = vmatprep.subr.mxu0 0.0
    %593 = vmatpush1.msra.mxu0 0.0
    %594 = vmatprep.subr.mxu0 0.0
    %595 = vmatpush1.msra.mxu0 0.0
    %596 = vmatprep.subr.mxu0 0.0
    %597 = vmatpush1.msra.mxu0 0.0
    %598 = vmatprep.subr.mxu0 0.0
    %599 = vmatpush1.msra.mxu0 0.0
    %600 = vmatprep.subr.mxu0 0.0
    %601 = vmatpush1.msra.mxu0 0.0
    %602 = vmatprep.subr.mxu0 0.0
    %603 = vmatpush1.msra.mxu0 0.0
    %604 = vmatprep.subr.mxu0 0.0
    %605 = vmatpush1.msra.mxu0 0.0
    %606 = vmatprep.subr.mxu0 0.0
    %607 = vmatpush1.msra.mxu0 0.0
    %608 = vmatprep.subr.mxu0 0.0
    %609 = vmatpush1.msra.mxu0 0.0
    %610 = vmatprep.subr.mxu0 0.0
    %611 = vmatpush1.msra.mxu0 0.0
    %612 = vmatprep.subr.mxu0 0.0
    %613 = vmatpush1.msra.mxu0 0.0
    %614 = vmatprep.subr.mxu0 0.0
    %615 = vmatpush1.msra.mxu0 %v46
    %616 = vmatprep.subr.mxu0 0.0
    %617 = vmatpush1.msra.mxu0 %v45
    %618 = vmatprep.subr.mxu0 0.0
    %619 = vmatpush1.msra.mxu0 %v44
    %620 = vmatprep.subr.mxu0 0.0
    %621 = vmatpush1.msra.mxu0 %v43
    %622 = vmatprep.subr.mxu0 0.0
    %623 = vmatpush2.msra.mxu0 0.0
    %624 = vmatprep.subr.mxu0 0.0
    %625 = vmatpush2.msra.mxu0 0.0
    %626 = vmatprep.subr.mxu0 0.0
    %627 = vmatpush2.msra.mxu0 0.0
    %628 = vmatprep.subr.mxu0 0.0
    %629 = vmatpush2.msra.mxu0 0.0
    %630 = vmatprep.subr.mxu0 0.0
    %631 = vmatpush2.msra.mxu0 0.0
    %632 = vmatprep.subr.mxu0 0.0
    %633 = vmatpush2.msra.mxu0 0.0
    %634 = vmatprep.subr.mxu0 0.0
    %635 = vmatpush2.msra.mxu0 0.0
    %636 = vmatprep.subr.mxu0 0.0
    %637 = vmatpush2.msra.mxu0 0.0
    %638 = vmatprep.subr.mxu0 0.0
    %639 = vmatpush2.msra.mxu0 0.0
    %640 = vmatprep.subr.mxu0 0.0
    %641 = vmatpush2.msra.mxu0 0.0
    %642 = vmatprep.subr.mxu0 0.0
    %643 = vmatpush2.msra.mxu0 0.0
    %644 = vmatprep.subr.mxu0 0.0
    %645 = vmatpush2.msra.mxu0 0.0
    %646 = vmatprep.subr.mxu0 0.0
    %647 = vmatpush2.msra.mxu0 0.0
    %648 = vmatprep.subr.mxu0 0.0
    %649 = vmatpush2.msra.mxu0 0.0
    %650 = vmatprep.subr.mxu0 0.0
    %651 = vmatpush2.msra.mxu0 0.0
    %652 = vmatprep.subr.mxu0 0.0
    %653 = vmatpush2.msra.mxu0 0.0
    %654 = vmatprep.mubr.f32.mxu0 0.0
    %655 = vmatmul.mubr.f32.gmra.mxu0 %v588
    %v656 = vpop.f32.mrf.mxu0
    %v657 = vadd.f32 0.0, %v656
    %v658 = vpop.f32.mrf.mxu0
    %659 = vdwg.mxu0
    %v660 = vadd.f32 %v584, %v657
    %v661 = vtanh.pop %v660
    %v662 = vxor.u32 %v660, 2147483648
    %v663 = vmul.f32 %v662, 1.442695
    %v664 = vpow.pop %v663
    %v665 = vadd.f32 %v664, 1.0
    %v666 = vrcp.pop %v665
    %v667 = vmul.f32 1.0, %v666
    %v668 = vsel %vm52, %v661, %v667
    %v669 = vmul.f32 %v668, %v466
    %671 = vrot.lane.b32.xlu0 %v668, 64
    %v672 = vpop.permute.xlu0 %671
    %v674 = vmul.f32 %v668, %v672
    %676 = vrot.lane.b32.xlu0 %v674, 32
    %v677 = vpop.permute.xlu0 %676
    %v679 = vadd.f32 %v669, %v677
    %v680 = vtanh.pop %v679
    %682 = vrot.lane.b32.xlu0 %v680, 64
    %v683 = vpop.permute.xlu0 %682
    %v685 = vmul.f32 %v668, %v683
    %vm686 = vcmp.eq.s32.totalorder %v47, 3
    %v687 = vsel %vm686, 1, 0
    %688 = vset.pattern.permute.xlu0 0
    %689 = vperm.xlu0 %688, %v687
    %v690 = vpop.permute.xlu0 %689
    %vm691 = vcmp.eq.s32.totalorder %v690, 1
    %v692 = vsel %vm691, %v685, %v479
    %s693 = scalar_lea.vmem %s0, 6
    %v694 = vld [vmem:[%s693] sm:$0x3]
    %696 = vrot.lane.b32.xlu0 %v582, 32
    %v697 = vpop.permute.xlu0 %696
    %v698 = vsel %vm56, %v697, 0
    %700 = vmatprep.subr.mxu0 0.0
    %701 = vmatpush1.msra.mxu0 0.0
    %702 = vmatprep.subr.mxu0 0.0
    %703 = vmatpush1.msra.mxu0 0.0
    %704 = vmatprep.subr.mxu0 0.0
    %705 = vmatpush1.msra.mxu0 0.0
    %706 = vmatprep.subr.mxu0 0.0
    %707 = vmatpush1.msra.mxu0 0.0
    %708 = vmatprep.subr.mxu0 0.0
    %709 = vmatpush1.msra.mxu0 0.0
    %710 = vmatprep.subr.mxu0 0.0
    %711 = vmatpush1.msra.mxu0 0.0
    %712 = vmatprep.subr.mxu0 0.0
    %713 = vmatpush1.msra.mxu0 0.0
    %714 = vmatprep.subr.mxu0 0.0
    %715 = vmatpush1.msra.mxu0 0.0
    %716 = vmatprep.subr.mxu0 0.0
    %717 = vmatpush1.msra.mxu0 0.0
    %718 = vmatprep.subr.mxu0 0.0
    %719 = vmatpush1.msra.mxu0 0.0
    %720 = vmatprep.subr.mxu0 0.0
    %721 = vmatpush1.msra.mxu0 0.0
    %722 = vmatprep.subr.mxu0 0.0
    %723 = vmatpush1.msra.mxu0 0.0
    %724 = vmatprep.subr.mxu0 0.0
    %725 = vmatpush1.msra.mxu0 %v42
    %726 = vmatprep.subr.mxu0 0.0
    %727 = vmatpush1.msra.mxu0 %v41
    %728 = vmatprep.subr.mxu0 0.0
    %729 = vmatpush1.msra.mxu0 %v40
    %730 = vmatprep.subr.mxu0 0.0
    %731 = vmatpush1.msra.mxu0 %v39
    %732 = vmatprep.subr.mxu0 0.0
    %733 = vmatpush2.msra.mxu0 0.0
    %734 = vmatprep.subr.mxu0 0.0
    %735 = vmatpush2.msra.mxu0 0.0
    %736 = vmatprep.subr.mxu0 0.0
    %737 = vmatpush2.msra.mxu0 0.0
    %738 = vmatprep.subr.mxu0 0.0
    %739 = vmatpush2.msra.mxu0 0.0
    %740 = vmatprep.subr.mxu0 0.0
    %741 = vmatpush2.msra.mxu0 0.0
    %742 = vmatprep.subr.mxu0 0.0
    %743 = vmatpush2.msra.mxu0 0.0
    %744 = vmatprep.subr.mxu0 0.0
    %745 = vmatpush2.msra.mxu0 0.0
    %746 = vmatprep.subr.mxu0 0.0
    %747 = vmatpush2.msra.mxu0 0.0
    %748 = vmatprep.subr.mxu0 0.0
    %749 = vmatpush2.msra.mxu0 0.0
    %750 = vmatprep.subr.mxu0 0.0
    %751 = vmatpush2.msra.mxu0 0.0
    %752 = vmatprep.subr.mxu0 0.0
    %753 = vmatpush2.msra.mxu0 0.0
    %754 = vmatprep.subr.mxu0 0.0
    %755 = vmatpush2.msra.mxu0 0.0
    %756 = vmatprep.subr.mxu0 0.0
    %757 = vmatpush2.msra.mxu0 0.0
    %758 = vmatprep.subr.mxu0 0.0
    %759 = vmatpush2.msra.mxu0 0.0
    %760 = vmatprep.subr.mxu0 0.0
    %761 = vmatpush2.msra.mxu0 0.0
    %762 = vmatprep.subr.mxu0 0.0
    %763 = vmatpush2.msra.mxu0 0.0
    %764 = vmatprep.mubr.f32.mxu0 0.0
    %765 = vmatmul.mubr.f32.gmra.mxu0 %v698
    %v766 = vpop.f32.mrf.mxu0
    %v767 = vadd.f32 0.0, %v766
    %v768 = vpop.f32.mrf.mxu0
    %769 = vdwg.mxu0
    %v770 = vadd.f32 %v694, %v767
    %v771 = vtanh.pop %v770
    %v772 = vxor.u32 %v770, 2147483648
    %v773 = vmul.f32 %v772, 1.442695
    %v774 = vpow.pop %v773
    %v775 = vadd.f32 %v774, 1.0
    %v776 = vrcp.pop %v775
    %v777 = vmul.f32 1.0, %v776
    %v778 = vsel %vm52, %v771, %v777
    %v779 = vmul.f32 %v778, %v576
    %781 = vrot.lane.b32.xlu0 %v778, 64
    %v782 = vpop.permute.xlu0 %781
    %v784 = vmul.f32 %v778, %v782
    %786 = vrot.lane.b32.xlu0 %v784, 32
    %v787 = vpop.permute.xlu0 %786
    %v789 = vadd.f32 %v779, %v787
    %v790 = vtanh.pop %v789
    %792 = vrot.lane.b32.xlu0 %v790, 64
    %v793 = vpop.permute.xlu0 %792
    %v795 = vmul.f32 %v778, %v793
    %s796 = scalar_lea.vmem %s1, 6
    %v797 = vld [vmem:[%s796] sm:$0x3]
    %799 = vrot.lane.b32.xlu0 %v685, 32
    %v800 = vpop.permute.xlu0 %799
    %v801 = vsel %vm56, %v800, 0
    %803 = vmatprep.subr.mxu0 0.0
    %804 = vmatpush1.msra.mxu0 0.0
    %805 = vmatprep.subr.mxu0 0.0
    %806 = vmatpush1.msra.mxu0 0.0
    %807 = vmatprep.subr.mxu0 0.0
    %808 = vmatpush1.msra.mxu0 0.0
    %809 = vmatprep.subr.mxu0 0.0
    %810 = vmatpush1.msra.mxu0 0.0
    %811 = vmatprep.subr.mxu0 0.0
    %812 = vmatpush1.msra.mxu0 0.0
    %813 = vmatprep.subr.mxu0 0.0
    %814 = vmatpush1.msra.mxu0 0.0
    %815 = vmatprep.subr.mxu0 0.0
    %816 = vmatpush1.msra.mxu0 0.0
    %817 = vmatprep.subr.mxu0 0.0
    %818 = vmatpush1.msra.mxu0 0.0
    %819 = vmatprep.subr.mxu0 0.0
    %820 = vmatpush1.msra.mxu0 0.0
    %821 = vmatprep.subr.mxu0 0.0
    %822 = vmatpush1.msra.mxu0 0.0
    %823 = vmatprep.subr.mxu0 0.0
    %824 = vmatpush1.msra.mxu0 0.0
    %825 = vmatprep.subr.mxu0 0.0
    %826 = vmatpush1.msra.mxu0 0.0
    %827 = vmatprep.subr.mxu0 0.0
    %828 = vmatpush1.msra.mxu0 %v46
    %829 = vmatprep.subr.mxu0 0.0
    %830 = vmatpush1.msra.mxu0 %v45
    %831 = vmatprep.subr.mxu0 0.0
    %832 = vmatpush1.msra.mxu0 %v44
    %833 = vmatprep.subr.mxu0 0.0
    %834 = vmatpush1.msra.mxu0 %v43
    %835 = vmatprep.subr.mxu0 0.0
    %836 = vmatpush2.msra.mxu0 0.0
    %837 = vmatprep.subr.mxu0 0.0
    %838 = vmatpush2.msra.mxu0 0.0
    %839 = vmatprep.subr.mxu0 0.0
    %840 = vmatpush2.msra.mxu0 0.0
    %841 = vmatprep.subr.mxu0 0.0
    %842 = vmatpush2.msra.mxu0 0.0
    %843 = vmatprep.subr.mxu0 0.0
    %844 = vmatpush2.msra.mxu0 0.0
    %845 = vmatprep.subr.mxu0 0.0
    %846 = vmatpush2.msra.mxu0 0.0
    %847 = vmatprep.subr.mxu0 0.0
    %848 = vmatpush2.msra.mxu0 0.0
    %849 = vmatprep.subr.mxu0 0.0
    %850 = vmatpush2.msra.mxu0 0.0
    %851 = vmatprep.subr.mxu0 0.0
    %852 = vmatpush2.msra.mxu0 0.0
    %853 = vmatprep.subr.mxu0 0.0
    %854 = vmatpush2.msra.mxu0 0.0
    %855 = vmatprep.subr.mxu0 0.0
    %856 = vmatpush2.msra.mxu0 0.0
    %857 = vmatprep.subr.mxu0 0.0
    %858 = vmatpush2.msra.mxu0 0.0
    %859 = vmatprep.subr.mxu0 0.0
    %860 = vmatpush2.msra.mxu0 0.0
    %861 = vmatprep.subr.mxu0 0.0
    %862 = vmatpush2.msra.mxu0 0.0
    %863 = vmatprep.subr.mxu0 0.0
    %864 = vmatpush2.msra.mxu0 0.0
    %865 = vmatprep.subr.mxu0 0.0
    %866 = vmatpush2.msra.mxu0 0.0
    %867 = vmatprep.mubr.f32.mxu0 0.0
    %868 = vmatmul.mubr.f32.gmra.mxu0 %v801
    %v869 = vpop.f32.mrf.mxu0
    %v870 = vadd.f32 0.0, %v869
    %v871 = vpop.f32.mrf.mxu0
    %872 = vdwg.mxu0
    %v873 = vadd.f32 %v797, %v870
    %v874 = vtanh.pop %v873
    %v875 = vxor.u32 %v873, 2147483648
    %v876 = vmul.f32 %v875, 1.442695
    %v877 = vpow.pop %v876
    %v878 = vadd.f32 %v877, 1.0
    %v879 = vrcp.pop %v878
    %v880 = vmul.f32 1.0, %v879
    %v881 = vsel %vm52, %v874, %v880
    %v882 = vmul.f32 %v881, %v679
    %884 = vrot.lane.b32.xlu0 %v881, 64
    %v885 = vpop.permute.xlu0 %884
    %v887 = vmul.f32 %v881, %v885
    %889 = vrot.lane.b32.xlu0 %v887, 32
    %v890 = vpop.permute.xlu0 %889
    %v892 = vadd.f32 %v882, %v890
    %v893 = vtanh.pop %v892
    %895 = vrot.lane.b32.xlu0 %v893, 64
    %v896 = vpop.permute.xlu0 %895
    %v898 = vmul.f32 %v881, %v896
    %vm899 = vcmp.eq.s32.totalorder %v47, 4
    %v900 = vsel %vm899, 1, 0
    %901 = vset.pattern.permute.xlu0 0
    %902 = vperm.xlu0 %901, %v900
    %v903 = vpop.permute.xlu0 %902
    %vm904 = vcmp.eq.s32.totalorder %v903, 1
    %v905 = vsel %vm904, %v898, %v692
    %s906 = scalar_lea.vmem %s0, 8
    %v907 = vld [vmem:[%s906] sm:$0x3]
    %909 = vrot.lane.b32.xlu0 %v795, 32
    %v910 = vpop.permute.xlu0 %909
    %v911 = vsel %vm56, %v910, 0
    %913 = vmatprep.subr.mxu0 0.0
    %914 = vmatpush1.msra.mxu0 0.0
    %915 = vmatprep.subr.mxu0 0.0
    %916 = vmatpush1.msra.mxu0 0.0
    %917 = vmatprep.subr.mxu0 0.0
    %918 = vmatpush1.msra.mxu0 0.0
    %919 = vmatprep.subr.mxu0 0.0
    %920 = vmatpush1.msra.mxu0 0.0
    %921 = vmatprep.subr.mxu0 0.0
    %922 = vmatpush1.msra.mxu0 0.0
    %923 = vmatprep.subr.mxu0 0.0
    %924 = vmatpush1.msra.mxu0 0.0
    %925 = vmatprep.subr.mxu0 0.0
    %926 = vmatpush1.msra.mxu0 0.0
    %927 = vmatprep.subr.mxu0 0.0
    %928 = vmatpush1.msra.mxu0 0.0
    %929 = vmatprep.subr.mxu0 0.0
    %930 = vmatpush1.msra.mxu0 0.0
    %931 = vmatprep.subr.mxu0 0.0
    %932 = vmatpush1.msra.mxu0 0.0
    %933 = vmatprep.subr.mxu0 0.0
    %934 = vmatpush1.msra.mxu0 0.0
    %935 = vmatprep.subr.mxu0 0.0
    %936 = vmatpush1.msra.mxu0 0.0
    %937 = vmatprep.subr.mxu0 0.0
    %938 = vmatpush1.msra.mxu0 %v42
    %939 = vmatprep.subr.mxu0 0.0
    %940 = vmatpush1.msra.mxu0 %v41
    %941 = vmatprep.subr.mxu0 0.0
    %942 = vmatpush1.msra.mxu0 %v40
    %943 = vmatprep.subr.mxu0 0.0
    %944 = vmatpush1.msra.mxu0 %v39
    %945 = vmatprep.subr.mxu0 0.0
    %946 = vmatpush2.msra.mxu0 0.0
    %947 = vmatprep.subr.mxu0 0.0
    %948 = vmatpush2.msra.mxu0 0.0
    %949 = vmatprep.subr.mxu0 0.0
    %950 = vmatpush2.msra.mxu0 0.0
    %951 = vmatprep.subr.mxu0 0.0
    %952 = vmatpush2.msra.mxu0 0.0
    %953 = vmatprep.subr.mxu0 0.0
    %954 = vmatpush2.msra.mxu0 0.0
    %955 = vmatprep.subr.mxu0 0.0
    %956 = vmatpush2.msra.mxu0 0.0
    %957 = vmatprep.subr.mxu0 0.0
    %958 = vmatpush2.msra.mxu0 0.0
    %959 = vmatprep.subr.mxu0 0.0
    %960 = vmatpush2.msra.mxu0 0.0
    %961 = vmatprep.subr.mxu0 0.0
    %962 = vmatpush2.msra.mxu0 0.0
    %963 = vmatprep.subr.mxu0 0.0
    %964 = vmatpush2.msra.mxu0 0.0
    %965 = vmatprep.subr.mxu0 0.0
    %966 = vmatpush2.msra.mxu0 0.0
    %967 = vmatprep.subr.mxu0 0.0
    %968 = vmatpush2.msra.mxu0 0.0
    %969 = vmatprep.subr.mxu0 0.0
    %970 = vmatpush2.msra.mxu0 0.0
    %971 = vmatprep.subr.mxu0 0.0
    %972 = vmatpush2.msra.mxu0 0.0
    %973 = vmatprep.subr.mxu0 0.0
    %974 = vmatpush2.msra.mxu0 0.0
    %975 = vmatprep.subr.mxu0 0.0
    %976 = vmatpush2.msra.mxu0 0.0
    %977 = vmatprep.mubr.f32.mxu0 0.0
    %978 = vmatmul.mubr.f32.gmra.mxu0 %v911
    %v979 = vpop.f32.mrf.mxu0
    %v980 = vadd.f32 0.0, %v979
    %v981 = vpop.f32.mrf.mxu0
    %982 = vdwg.mxu0
    %v983 = vadd.f32 %v907, %v980
    %v984 = vtanh.pop %v983
    %v985 = vxor.u32 %v983, 2147483648
    %v986 = vmul.f32 %v985, 1.442695
    %v987 = vpow.pop %v986
    %v988 = vadd.f32 %v987, 1.0
    %v989 = vrcp.pop %v988
    %v990 = vmul.f32 1.0, %v989
    %v991 = vsel %vm52, %v984, %v990
    %v992 = vmul.f32 %v991, %v789
    %994 = vrot.lane.b32.xlu0 %v991, 64
    %v995 = vpop.permute.xlu0 %994
    %v997 = vmul.f32 %v991, %v995
    %999 = vrot.lane.b32.xlu0 %v997, 32
    %v1000 = vpop.permute.xlu0 %999
    %v1002 = vadd.f32 %v992, %v1000
    %v1003 = vtanh.pop %v1002
    %1005 = vrot.lane.b32.xlu0 %v1003, 64
    %v1006 = vpop.permute.xlu0 %1005
    %v1008 = vmul.f32 %v991, %v1006
    %s1009 = scalar_lea.vmem %s1, 8
    %v1010 = vld [vmem:[%s1009] sm:$0x3]
    %1012 = vrot.lane.b32.xlu0 %v898, 32
    %v1013 = vpop.permute.xlu0 %1012
    %v1014 = vsel %vm56, %v1013, 0
    %1016 = vmatprep.subr.mxu0 0.0
    %1017 = vmatpush1.msra.mxu0 0.0
    %1018 = vmatprep.subr.mxu0 0.0
    %1019 = vmatpush1.msra.mxu0 0.0
    %1020 = vmatprep.subr.mxu0 0.0
    %1021 = vmatpush1.msra.mxu0 0.0
    %1022 = vmatprep.subr.mxu0 0.0
    %1023 = vmatpush1.msra.mxu0 0.0
    %1024 = vmatprep.subr.mxu0 0.0
    %1025 = vmatpush1.msra.mxu0 0.0
    %1026 = vmatprep.subr.mxu0 0.0
    %1027 = vmatpush1.msra.mxu0 0.0
    %1028 = vmatprep.subr.mxu0 0.0
    %1029 = vmatpush1.msra.mxu0 0.0
    %1030 = vmatprep.subr.mxu0 0.0
    %1031 = vmatpush1.msra.mxu0 0.0
    %1032 = vmatprep.subr.mxu0 0.0
    %1033 = vmatpush1.msra.mxu0 0.0
    %1034 = vmatprep.subr.mxu0 0.0
    %1035 = vmatpush1.msra.mxu0 0.0
    %1036 = vmatprep.subr.mxu0 0.0
    %1037 = vmatpush1.msra.mxu0 0.0
    %1038 = vmatprep.subr.mxu0 0.0
    %1039 = vmatpush1.msra.mxu0 0.0
    %1040 = vmatprep.subr.mxu0 0.0
    %1041 = vmatpush1.msra.mxu0 %v46
    %1042 = vmatprep.subr.mxu0 0.0
    %1043 = vmatpush1.msra.mxu0 %v45
    %1044 = vmatprep.subr.mxu0 0.0
    %1045 = vmatpush1.msra.mxu0 %v44
    %1046 = vmatprep.subr.mxu0 0.0
    %1047 = vmatpush1.msra.mxu0 %v43
    %1048 = vmatprep.subr.mxu0 0.0
    %1049 = vmatpush2.msra.mxu0 0.0
    %1050 = vmatprep.subr.mxu0 0.0
    %1051 = vmatpush2.msra.mxu0 0.0
    %1052 = vmatprep.subr.mxu0 0.0
    %1053 = vmatpush2.msra.mxu0 0.0
    %1054 = vmatprep.subr.mxu0 0.0
    %1055 = vmatpush2.msra.mxu0 0.0
    %1056 = vmatprep.subr.mxu0 0.0
    %1057 = vmatpush2.msra.mxu0 0.0
    %1058 = vmatprep.subr.mxu0 0.0
    %1059 = vmatpush2.msra.mxu0 0.0
    %1060 = vmatprep.subr.mxu0 0.0
    %1061 = vmatpush2.msra.mxu0 0.0
    %1062 = vmatprep.subr.mxu0 0.0
    %1063 = vmatpush2.msra.mxu0 0.0
    %1064 = vmatprep.subr.mxu0 0.0
    %1065 = vmatpush2.msra.mxu0 0.0
    %1066 = vmatprep.subr.mxu0 0.0
    %1067 = vmatpush2.msra.mxu0 0.0
    %1068 = vmatprep.subr.mxu0 0.0
    %1069 = vmatpush2.msra.mxu0 0.0
    %1070 = vmatprep.subr.mxu0 0.0
    %1071 = vmatpush2.msra.mxu0 0.0
    %1072 = vmatprep.subr.mxu0 0.0
    %1073 = vmatpush2.msra.mxu0 0.0
    %1074 = vmatprep.subr.mxu0 0.0
    %1075 = vmatpush2.msra.mxu0 0.0
    %1076 = vmatprep.subr.mxu0 0.0
    %1077 = vmatpush2.msra.mxu0 0.0
    %1078 = vmatprep.subr.mxu0 0.0
    %1079 = vmatpush2.msra.mxu0 0.0
    %1080 = vmatprep.mubr.f32.mxu0 0.0
    %1081 = vmatmul.mubr.f32.gmra.mxu0 %v1014
    %v1082 = vpop.f32.mrf.mxu0
    %v1083 = vadd.f32 0.0, %v1082
    %v1084 = vpop.f32.mrf.mxu0
    %1085 = vdwg.mxu0
    %v1086 = vadd.f32 %v1010, %v1083
    %v1087 = vtanh.pop %v1086
    %v1088 = vxor.u32 %v1086, 2147483648
    %v1089 = vmul.f32 %v1088, 1.442695
    %v1090 = vpow.pop %v1089
    %v1091 = vadd.f32 %v1090, 1.0
    %v1092 = vrcp.pop %v1091
    %v1093 = vmul.f32 1.0, %v1092
    %v1094 = vsel %vm52, %v1087, %v1093
    %v1095 = vmul.f32 %v1094, %v892
    %1097 = vrot.lane.b32.xlu0 %v1094, 64
    %v1098 = vpop.permute.xlu0 %1097
    %v1100 = vmul.f32 %v1094, %v1098
    %1102 = vrot.lane.b32.xlu0 %v1100, 32
    %v1103 = vpop.permute.xlu0 %1102
    %v1105 = vadd.f32 %v1095, %v1103
    %v1106 = vtanh.pop %v1105
    %1108 = vrot.lane.b32.xlu0 %v1106, 64
    %v1109 = vpop.permute.xlu0 %1108
    %v1111 = vmul.f32 %v1094, %v1109
    %vm1112 = vcmp.eq.s32.totalorder %v47, 5
    %v1113 = vsel %vm1112, 1, 0
    %1114 = vset.pattern.permute.xlu0 0
    %1115 = vperm.xlu0 %1114, %v1113
    %v1116 = vpop.permute.xlu0 %1115
    %vm1117 = vcmp.eq.s32.totalorder %v1116, 1
    %v1118 = vsel %vm1117, %v1111, %v905
    %s1119 = scalar_lea.vmem %s0, 10
    %v1120 = vld [vmem:[%s1119] sm:$0x3]
    %1122 = vrot.lane.b32.xlu0 %v1008, 32
    %v1123 = vpop.permute.xlu0 %1122
    %v1124 = vsel %vm56, %v1123, 0
    %1126 = vmatprep.subr.mxu0 0.0
    %1127 = vmatpush1.msra.mxu0 0.0
    %1128 = vmatprep.subr.mxu0 0.0
    %1129 = vmatpush1.msra.mxu0 0.0
    %1130 = vmatprep.subr.mxu0 0.0
    %1131 = vmatpush1.msra.mxu0 0.0
    %1132 = vmatprep.subr.mxu0 0.0
    %1133 = vmatpush1.msra.mxu0 0.0
    %1134 = vmatprep.subr.mxu0 0.0
    %1135 = vmatpush1.msra.mxu0 0.0
    %1136 = vmatprep.subr.mxu0 0.0
    %1137 = vmatpush1.msra.mxu0 0.0
    %1138 = vmatprep.subr.mxu0 0.0
    %1139 = vmatpush1.msra.mxu0 0.0
    %1140 = vmatprep.subr.mxu0 0.0
    %1141 = vmatpush1.msra.mxu0 0.0
    %1142 = vmatprep.subr.mxu0 0.0
    %1143 = vmatpush1.msra.mxu0 0.0
    %1144 = vmatprep.subr.mxu0 0.0
    %1145 = vmatpush1.msra.mxu0 0.0
    %1146 = vmatprep.subr.mxu0 0.0
    %1147 = vmatpush1.msra.mxu0 0.0
    %1148 = vmatprep.subr.mxu0 0.0
    %1149 = vmatpush1.msra.mxu0 0.0
    %1150 = vmatprep.subr.mxu0 0.0
    %1151 = vmatpush1.msra.mxu0 %v42
    %1152 = vmatprep.subr.mxu0 0.0
    %1153 = vmatpush1.msra.mxu0 %v41
    %1154 = vmatprep.subr.mxu0 0.0
    %1155 = vmatpush1.msra.mxu0 %v40
    %1156 = vmatprep.subr.mxu0 0.0
    %1157 = vmatpush1.msra.mxu0 %v39
    %1158 = vmatprep.subr.mxu0 0.0
    %1159 = vmatpush2.msra.mxu0 0.0
    %1160 = vmatprep.subr.mxu0 0.0
    %1161 = vmatpush2.msra.mxu0 0.0
    %1162 = vmatprep.subr.mxu0 0.0
    %1163 = vmatpush2.msra.mxu0 0.0
    %1164 = vmatprep.subr.mxu0 0.0
    %1165 = vmatpush2.msra.mxu0 0.0
    %1166 = vmatprep.subr.mxu0 0.0
    %1167 = vmatpush2.msra.mxu0 0.0
    %1168 = vmatprep.subr.mxu0 0.0
    %1169 = vmatpush2.msra.mxu0 0.0
    %1170 = vmatprep.subr.mxu0 0.0
    %1171 = vmatpush2.msra.mxu0 0.0
    %1172 = vmatprep.subr.mxu0 0.0
    %1173 = vmatpush2.msra.mxu0 0.0
    %1174 = vmatprep.subr.mxu0 0.0
    %1175 = vmatpush2.msra.mxu0 0.0
    %1176 = vmatprep.subr.mxu0 0.0
    %1177 = vmatpush2.msra.mxu0 0.0
    %1178 = vmatprep.subr.mxu0 0.0
    %1179 = vmatpush2.msra.mxu0 0.0
    %1180 = vmatprep.subr.mxu0 0.0
    %1181 = vmatpush2.msra.mxu0 0.0
    %1182 = vmatprep.subr.mxu0 0.0
    %1183 = vmatpush2.msra.mxu0 0.0
    %1184 = vmatprep.subr.mxu0 0.0
    %1185 = vmatpush2.msra.mxu0 0.0
    %1186 = vmatprep.subr.mxu0 0.0
    %1187 = vmatpush2.msra.mxu0 0.0
    %1188 = vmatprep.subr.mxu0 0.0
    %1189 = vmatpush2.msra.mxu0 0.0
    %1190 = vmatprep.mubr.f32.mxu0 0.0
    %1191 = vmatmul.mubr.f32.gmra.mxu0 %v1124
    %v1192 = vpop.f32.mrf.mxu0
    %v1193 = vadd.f32 0.0, %v1192
    %v1194 = vpop.f32.mrf.mxu0
    %1195 = vdwg.mxu0
    %v1196 = vadd.f32 %v1120, %v1193
    %v1197 = vtanh.pop %v1196
    %v1198 = vxor.u32 %v1196, 2147483648
    %v1199 = vmul.f32 %v1198, 1.442695
    %v1200 = vpow.pop %v1199
    %v1201 = vadd.f32 %v1200, 1.0
    %v1202 = vrcp.pop %v1201
    %v1203 = vmul.f32 1.0, %v1202
    %v1204 = vsel %vm52, %v1197, %v1203
    %v1205 = vmul.f32 %v1204, %v1002
    %1207 = vrot.lane.b32.xlu0 %v1204, 64
    %v1208 = vpop.permute.xlu0 %1207
    %v1210 = vmul.f32 %v1204, %v1208
    %1212 = vrot.lane.b32.xlu0 %v1210, 32
    %v1213 = vpop.permute.xlu0 %1212
    %v1215 = vadd.f32 %v1205, %v1213
    %v1216 = vtanh.pop %v1215
    %1218 = vrot.lane.b32.xlu0 %v1216, 64
    %v1219 = vpop.permute.xlu0 %1218
    %v1221 = vmul.f32 %v1204, %v1219
    %s1222 = scalar_lea.vmem %s1, 10
    %v1223 = vld [vmem:[%s1222] sm:$0x3]
    %1225 = vrot.lane.b32.xlu0 %v1111, 32
    %v1226 = vpop.permute.xlu0 %1225
    %v1227 = vsel %vm56, %v1226, 0
    %1229 = vmatprep.subr.mxu0 0.0
    %1230 = vmatpush1.msra.mxu0 0.0
    %1231 = vmatprep.subr.mxu0 0.0
    %1232 = vmatpush1.msra.mxu0 0.0
    %1233 = vmatprep.subr.mxu0 0.0
    %1234 = vmatpush1.msra.mxu0 0.0
    %1235 = vmatprep.subr.mxu0 0.0
    %1236 = vmatpush1.msra.mxu0 0.0
    %1237 = vmatprep.subr.mxu0 0.0
    %1238 = vmatpush1.msra.mxu0 0.0
    %1239 = vmatprep.subr.mxu0 0.0
    %1240 = vmatpush1.msra.mxu0 0.0
    %1241 = vmatprep.subr.mxu0 0.0
    %1242 = vmatpush1.msra.mxu0 0.0
    %1243 = vmatprep.subr.mxu0 0.0
    %1244 = vmatpush1.msra.mxu0 0.0
    %1245 = vmatprep.subr.mxu0 0.0
    %1246 = vmatpush1.msra.mxu0 0.0
    %1247 = vmatprep.subr.mxu0 0.0
    %1248 = vmatpush1.msra.mxu0 0.0
    %1249 = vmatprep.subr.mxu0 0.0
    %1250 = vmatpush1.msra.mxu0 0.0
    %1251 = vmatprep.subr.mxu0 0.0
    %1252 = vmatpush1.msra.mxu0 0.0
    %1253 = vmatprep.subr.mxu0 0.0
    %1254 = vmatpush1.msra.mxu0 %v46
    %1255 = vmatprep.subr.mxu0 0.0
    %1256 = vmatpush1.msra.mxu0 %v45
    %1257 = vmatprep.subr.mxu0 0.0
    %1258 = vmatpush1.msra.mxu0 %v44
    %1259 = vmatprep.subr.mxu0 0.0
    %1260 = vmatpush1.msra.mxu0 %v43
    %1261 = vmatprep.subr.mxu0 0.0
    %1262 = vmatpush2.msra.mxu0 0.0
    %1263 = vmatprep.subr.mxu0 0.0
    %1264 = vmatpush2.msra.mxu0 0.0
    %1265 = vmatprep.subr.mxu0 0.0
    %1266 = vmatpush2.msra.mxu0 0.0
    %1267 = vmatprep.subr.mxu0 0.0
    %1268 = vmatpush2.msra.mxu0 0.0
    %1269 = vmatprep.subr.mxu0 0.0
    %1270 = vmatpush2.msra.mxu0 0.0
    %1271 = vmatprep.subr.mxu0 0.0
    %1272 = vmatpush2.msra.mxu0 0.0
    %1273 = vmatprep.subr.mxu0 0.0
    %1274 = vmatpush2.msra.mxu0 0.0
    %1275 = vmatprep.subr.mxu0 0.0
    %1276 = vmatpush2.msra.mxu0 0.0
    %1277 = vmatprep.subr.mxu0 0.0
    %1278 = vmatpush2.msra.mxu0 0.0
    %1279 = vmatprep.subr.mxu0 0.0
    %1280 = vmatpush2.msra.mxu0 0.0
    %1281 = vmatprep.subr.mxu0 0.0
    %1282 = vmatpush2.msra.mxu0 0.0
    %1283 = vmatprep.subr.mxu0 0.0
    %1284 = vmatpush2.msra.mxu0 0.0
    %1285 = vmatprep.subr.mxu0 0.0
    %1286 = vmatpush2.msra.mxu0 0.0
    %1287 = vmatprep.subr.mxu0 0.0
    %1288 = vmatpush2.msra.mxu0 0.0
    %1289 = vmatprep.subr.mxu0 0.0
    %1290 = vmatpush2.msra.mxu0 0.0
    %1291 = vmatprep.subr.mxu0 0.0
    %1292 = vmatpush2.msra.mxu0 0.0
    %1293 = vmatprep.mubr.f32.mxu0 0.0
    %1294 = vmatmul.mubr.f32.gmra.mxu0 %v1227
    %v1295 = vpop.f32.mrf.mxu0
    %v1296 = vadd.f32 0.0, %v1295
    %v1297 = vpop.f32.mrf.mxu0
    %1298 = vdwg.mxu0
    %v1299 = vadd.f32 %v1223, %v1296
    %v1300 = vtanh.pop %v1299
    %v1301 = vxor.u32 %v1299, 2147483648
    %v1302 = vmul.f32 %v1301, 1.442695
    %v1303 = vpow.pop %v1302
    %v1304 = vadd.f32 %v1303, 1.0
    %v1305 = vrcp.pop %v1304
    %v1306 = vmul.f32 1.0, %v1305
    %v1307 = vsel %vm52, %v1300, %v1306
    %v1308 = vmul.f32 %v1307, %v1105
    %1310 = vrot.lane.b32.xlu0 %v1307, 64
    %v1311 = vpop.permute.xlu0 %1310
    %v1313 = vmul.f32 %v1307, %v1311
    %1315 = vrot.lane.b32.xlu0 %v1313, 32
    %v1316 = vpop.permute.xlu0 %1315
    %v1318 = vadd.f32 %v1308, %v1316
    %v1319 = vtanh.pop %v1318
    %1321 = vrot.lane.b32.xlu0 %v1319, 64
    %v1322 = vpop.permute.xlu0 %1321
    %v1324 = vmul.f32 %v1307, %v1322
    %vm1325 = vcmp.eq.s32.totalorder %v47, 6
    %v1326 = vsel %vm1325, 1, 0
    %1327 = vset.pattern.permute.xlu0 0
    %1328 = vperm.xlu0 %1327, %v1326
    %v1329 = vpop.permute.xlu0 %1328
    %vm1330 = vcmp.eq.s32.totalorder %v1329, 1
    %v1331 = vsel %vm1330, %v1324, %v1118
    %s1332 = scalar_lea.vmem %s0, 12
    %v1333 = vld [vmem:[%s1332] sm:$0x3]
    %1335 = vrot.lane.b32.xlu0 %v1221, 32
    %v1336 = vpop.permute.xlu0 %1335
    %v1337 = vsel %vm56, %v1336, 0
    %1339 = vmatprep.subr.mxu0 0.0
    %1340 = vmatpush1.msra.mxu0 0.0
    %1341 = vmatprep.subr.mxu0 0.0
    %1342 = vmatpush1.msra.mxu0 0.0
    %1343 = vmatprep.subr.mxu0 0.0
    %1344 = vmatpush1.msra.mxu0 0.0
    %1345 = vmatprep.subr.mxu0 0.0
    %1346 = vmatpush1.msra.mxu0 0.0
    %1347 = vmatprep.subr.mxu0 0.0
    %1348 = vmatpush1.msra.mxu0 0.0
    %1349 = vmatprep.subr.mxu0 0.0
    %1350 = vmatpush1.msra.mxu0 0.0
    %1351 = vmatprep.subr.mxu0 0.0
    %1352 = vmatpush1.msra.mxu0 0.0
    %1353 = vmatprep.subr.mxu0 0.0
    %1354 = vmatpush1.msra.mxu0 0.0
    %1355 = vmatprep.subr.mxu0 0.0
    %1356 = vmatpush1.msra.mxu0 0.0
    %1357 = vmatprep.subr.mxu0 0.0
    %1358 = vmatpush1.msra.mxu0 0.0
    %1359 = vmatprep.subr.mxu0 0.0
    %1360 = vmatpush1.msra.mxu0 0.0
    %1361 = vmatprep.subr.mxu0 0.0
    %1362 = vmatpush1.msra.mxu0 0.0
    %1363 = vmatprep.subr.mxu0 0.0
    %1364 = vmatpush1.msra.mxu0 %v42
    %1365 = vmatprep.subr.mxu0 0.0
    %1366 = vmatpush1.msra.mxu0 %v41
    %1367 = vmatprep.subr.mxu0 0.0
    %1368 = vmatpush1.msra.mxu0 %v40
    %1369 = vmatprep.subr.mxu0 0.0
    %1370 = vmatpush1.msra.mxu0 %v39
    %1371 = vmatprep.subr.mxu0 0.0
    %1372 = vmatpush2.msra.mxu0 0.0
    %1373 = vmatprep.subr.mxu0 0.0
    %1374 = vmatpush2.msra.mxu0 0.0
    %1375 = vmatprep.subr.mxu0 0.0
    %1376 = vmatpush2.msra.mxu0 0.0
    %1377 = vmatprep.subr.mxu0 0.0
    %1378 = vmatpush2.msra.mxu0 0.0
    %1379 = vmatprep.subr.mxu0 0.0
    %1380 = vmatpush2.msra.mxu0 0.0
    %1381 = vmatprep.subr.mxu0 0.0
    %1382 = vmatpush2.msra.mxu0 0.0
    %1383 = vmatprep.subr.mxu0 0.0
    %1384 = vmatpush2.msra.mxu0 0.0
    %1385 = vmatprep.subr.mxu0 0.0
    %1386 = vmatpush2.msra.mxu0 0.0
    %1387 = vmatprep.subr.mxu0 0.0
    %1388 = vmatpush2.msra.mxu0 0.0
    %1389 = vmatprep.subr.mxu0 0.0
    %1390 = vmatpush2.msra.mxu0 0.0
    %1391 = vmatprep.subr.mxu0 0.0
    %1392 = vmatpush2.msra.mxu0 0.0
    %1393 = vmatprep.subr.mxu0 0.0
    %1394 = vmatpush2.msra.mxu0 0.0
    %1395 = vmatprep.subr.mxu0 0.0
    %1396 = vmatpush2.msra.mxu0 0.0
    %1397 = vmatprep.subr.mxu0 0.0
    %1398 = vmatpush2.msra.mxu0 0.0
    %1399 = vmatprep.subr.mxu0 0.0
    %1400 = vmatpush2.msra.mxu0 0.0
    %1401 = vmatprep.subr.mxu0 0.0
    %1402 = vmatpush2.msra.mxu0 0.0
    %1403 = vmatprep.mubr.f32.mxu0 0.0
    %1404 = vmatmul.mubr.f32.gmra.mxu0 %v1337
    %v1405 = vpop.f32.mrf.mxu0
    %v1406 = vadd.f32 0.0, %v1405
    %v1407 = vpop.f32.mrf.mxu0
    %1408 = vdwg.mxu0
    %v1409 = vadd.f32 %v1333, %v1406
    %v1410 = vtanh.pop %v1409
    %v1411 = vxor.u32 %v1409, 2147483648
    %v1412 = vmul.f32 %v1411, 1.442695
    %v1413 = vpow.pop %v1412
    %v1414 = vadd.f32 %v1413, 1.0
    %v1415 = vrcp.pop %v1414
    %v1416 = vmul.f32 1.0, %v1415
    %v1417 = vsel %vm52, %v1410, %v1416
    %v1418 = vmul.f32 %v1417, %v1215
    %1420 = vrot.lane.b32.xlu0 %v1417, 64
    %v1421 = vpop.permute.xlu0 %1420
    %v1423 = vmul.f32 %v1417, %v1421
    %1425 = vrot.lane.b32.xlu0 %v1423, 32
    %v1426 = vpop.permute.xlu0 %1425
    %v1428 = vadd.f32 %v1418, %v1426
    %v1429 = vtanh.pop %v1428
    %1431 = vrot.lane.b32.xlu0 %v1429, 64
    %v1432 = vpop.permute.xlu0 %1431
    %v1434 = vmul.f32 %v1417, %v1432
    %s1435 = scalar_lea.vmem %s0, 14
    %v1436 = vld [vmem:[%s1435] sm:$0x3]
    %1438 = vrot.lane.b32.xlu0 %v1434, 32
    %v1439 = vpop.permute.xlu0 %1438
    %v1440 = vsel %vm56, %v1439, 0
    %1442 = vmatprep.subr.mxu0 0.0
    %1443 = vmatpush1.msra.mxu0 0.0
    %1444 = vmatprep.subr.mxu0 0.0
    %1445 = vmatpush1.msra.mxu0 0.0
    %1446 = vmatprep.subr.mxu0 0.0
    %1447 = vmatpush1.msra.mxu0 0.0
    %1448 = vmatprep.subr.mxu0 0.0
    %1449 = vmatpush1.msra.mxu0 0.0
    %1450 = vmatprep.subr.mxu0 0.0
    %1451 = vmatpush1.msra.mxu0 0.0
    %1452 = vmatprep.subr.mxu0 0.0
    %1453 = vmatpush1.msra.mxu0 0.0
    %1454 = vmatprep.subr.mxu0 0.0
    %1455 = vmatpush1.msra.mxu0 0.0
    %1456 = vmatprep.subr.mxu0 0.0
    %1457 = vmatpush1.msra.mxu0 0.0
    %1458 = vmatprep.subr.mxu0 0.0
    %1459 = vmatpush1.msra.mxu0 0.0
    %1460 = vmatprep.subr.mxu0 0.0
    %1461 = vmatpush1.msra.mxu0 0.0
    %1462 = vmatprep.subr.mxu0 0.0
    %1463 = vmatpush1.msra.mxu0 0.0
    %1464 = vmatprep.subr.mxu0 0.0
    %1465 = vmatpush1.msra.mxu0 0.0
    %1466 = vmatprep.subr.mxu0 0.0
    %1467 = vmatpush1.msra.mxu0 %v42
    %1468 = vmatprep.subr.mxu0 0.0
    %1469 = vmatpush1.msra.mxu0 %v41
    %1470 = vmatprep.subr.mxu0 0.0
    %1471 = vmatpush1.msra.mxu0 %v40
    %1472 = vmatprep.subr.mxu0 0.0
    %1473 = vmatpush1.msra.mxu0 %v39
    %1474 = vmatprep.subr.mxu0 0.0
    %1475 = vmatpush2.msra.mxu0 0.0
    %1476 = vmatprep.subr.mxu0 0.0
    %1477 = vmatpush2.msra.mxu0 0.0
    %1478 = vmatprep.subr.mxu0 0.0
    %1479 = vmatpush2.msra.mxu0 0.0
    %1480 = vmatprep.subr.mxu0 0.0
    %1481 = vmatpush2.msra.mxu0 0.0
    %1482 = vmatprep.subr.mxu0 0.0
    %1483 = vmatpush2.msra.mxu0 0.0
    %1484 = vmatprep.subr.mxu0 0.0
    %1485 = vmatpush2.msra.mxu0 0.0
    %1486 = vmatprep.subr.mxu0 0.0
    %1487 = vmatpush2.msra.mxu0 0.0
    %1488 = vmatprep.subr.mxu0 0.0
    %1489 = vmatpush2.msra.mxu0 0.0
    %1490 = vmatprep.subr.mxu0 0.0
    %1491 = vmatpush2.msra.mxu0 0.0
    %1492 = vmatprep.subr.mxu0 0.0
    %1493 = vmatpush2.msra.mxu0 0.0
    %1494 = vmatprep.subr.mxu0 0.0
    %1495 = vmatpush2.msra.mxu0 0.0
    %1496 = vmatprep.subr.mxu0 0.0
    %1497 = vmatpush2.msra.mxu0 0.0
    %1498 = vmatprep.subr.mxu0 0.0
    %1499 = vmatpush2.msra.mxu0 0.0
    %1500 = vmatprep.subr.mxu0 0.0
    %1501 = vmatpush2.msra.mxu0 0.0
    %1502 = vmatprep.subr.mxu0 0.0
    %1503 = vmatpush2.msra.mxu0 0.0
    %1504 = vmatprep.subr.mxu0 0.0
    %1505 = vmatpush2.msra.mxu0 0.0
    %1506 = vmatprep.mubr.f32.mxu0 0.0
    %1507 = vmatmul.mubr.f32.gmra.mxu0 %v1440
    %v1508 = vpop.f32.mrf.mxu0
    %v1509 = vadd.f32 0.0, %v1508
    %v1510 = vpop.f32.mrf.mxu0
    %1511 = vdwg.mxu0
    %v1512 = vadd.f32 %v1436, %v1509
    %v1513 = vtanh.pop %v1512
    %v1514 = vxor.u32 %v1512, 2147483648
    %v1515 = vmul.f32 %v1514, 1.442695
    %v1516 = vpow.pop %v1515
    %v1517 = vadd.f32 %v1516, 1.0
    %v1518 = vrcp.pop %v1517
    %v1519 = vmul.f32 1.0, %v1518
    %v1520 = vsel %vm52, %v1513, %v1519
    %v1521 = vmul.f32 %v1520, %v1428
    %1523 = vrot.lane.b32.xlu0 %v1520, 64
    %v1524 = vpop.permute.xlu0 %1523
    %v1526 = vmul.f32 %v1520, %v1524
    %1528 = vrot.lane.b32.xlu0 %v1526, 32
    %v1529 = vpop.permute.xlu0 %1528
    %v1531 = vadd.f32 %v1521, %v1529
    %v1532 = vtanh.pop %v1531
    %1534 = vrot.lane.b32.xlu0 %v1532, 64
    %v1535 = vpop.permute.xlu0 %1534
    %v1537 = vmul.f32 %v1520, %v1535
    %v1538 = vld [vmem:[%s7] sm:$0xff]
    %v1539 = vld [vmem:[%s7 + $0x8] sm:$0xff]
    %v1540 = vld [vmem:[%s7 + $0x10] sm:$0xff]
    %v1541 = vld [vmem:[%s7 + $0x18] sm:$0xff]
    %v1542 = vld [vmem:[%s8] sm:$0xff]
    %v1543 = vld [vmem:[%s8 + $0x8] sm:$0xff]
    %v1544 = vld [vmem:[%s8 + $0x10] sm:$0xff]
    %v1545 = vld [vmem:[%s8 + $0x18] sm:$0xff]
    %1547 = vrot.lane.b32.xlu0 %v1331, 32
    %v1548 = vpop.permute.xlu0 %1547
    %v1549 = vsel %vm56, %v1548, 0
    %1551 = vmatprep.subr.mxu0 0.0
    %1552 = vmatpush1.msra.mxu0 0.0
    %1553 = vmatprep.subr.mxu0 0.0
    %1554 = vmatpush1.msra.mxu0 0.0
    %1555 = vmatprep.subr.mxu0 0.0
    %1556 = vmatpush1.msra.mxu0 0.0
    %1557 = vmatprep.subr.mxu0 0.0
    %1558 = vmatpush1.msra.mxu0 0.0
    %1559 = vmatprep.subr.mxu0 0.0
    %1560 = vmatpush1.msra.mxu0 0.0
    %1561 = vmatprep.subr.mxu0 0.0
    %1562 = vmatpush1.msra.mxu0 0.0
    %1563 = vmatprep.subr.mxu0 0.0
    %1564 = vmatpush1.msra.mxu0 0.0
    %1565 = vmatprep.subr.mxu0 0.0
    %1566 = vmatpush1.msra.mxu0 0.0
    %1567 = vmatprep.subr.mxu0 0.0
    %1568 = vmatpush1.msra.mxu0 0.0
    %1569 = vmatprep.subr.mxu0 0.0
    %1570 = vmatpush1.msra.mxu0 0.0
    %1571 = vmatprep.subr.mxu0 0.0
    %1572 = vmatpush1.msra.mxu0 0.0
    %1573 = vmatprep.subr.mxu0 0.0
    %1574 = vmatpush1.msra.mxu0 0.0
    %1575 = vmatprep.subr.mxu0 0.0
    %1576 = vmatpush1.msra.mxu0 %v1545
    %1577 = vmatprep.subr.mxu0 0.0
    %1578 = vmatpush1.msra.mxu0 %v1544
    %1579 = vmatprep.subr.mxu0 0.0
    %1580 = vmatpush1.msra.mxu0 %v1543
    %1581 = vmatprep.subr.mxu0 0.0
    %1582 = vmatpush1.msra.mxu0 %v1542
    %1583 = vmatprep.subr.mxu0 0.0
    %1584 = vmatpush2.msra.mxu0 0.0
    %1585 = vmatprep.subr.mxu0 0.0
    %1586 = vmatpush2.msra.mxu0 0.0
    %1587 = vmatprep.subr.mxu0 0.0
    %1588 = vmatpush2.msra.mxu0 0.0
    %1589 = vmatprep.subr.mxu0 0.0
    %1590 = vmatpush2.msra.mxu0 0.0
    %1591 = vmatprep.subr.mxu0 0.0
    %1592 = vmatpush2.msra.mxu0 0.0
    %1593 = vmatprep.subr.mxu0 0.0
    %1594 = vmatpush2.msra.mxu0 0.0
    %1595 = vmatprep.subr.mxu0 0.0
    %1596 = vmatpush2.msra.mxu0 0.0
    %1597 = vmatprep.subr.mxu0 0.0
    %1598 = vmatpush2.msra.mxu0 0.0
    %1599 = vmatprep.subr.mxu0 0.0
    %1600 = vmatpush2.msra.mxu0 0.0
    %1601 = vmatprep.subr.mxu0 0.0
    %1602 = vmatpush2.msra.mxu0 0.0
    %1603 = vmatprep.subr.mxu0 0.0
    %1604 = vmatpush2.msra.mxu0 0.0
    %1605 = vmatprep.subr.mxu0 0.0
    %1606 = vmatpush2.msra.mxu0 0.0
    %1607 = vmatprep.subr.mxu0 0.0
    %1608 = vmatpush2.msra.mxu0 0.0
    %1609 = vmatprep.subr.mxu0 0.0
    %1610 = vmatpush2.msra.mxu0 0.0
    %1611 = vmatprep.subr.mxu0 0.0
    %1612 = vmatpush2.msra.mxu0 0.0
    %1613 = vmatprep.subr.mxu0 0.0
    %1614 = vmatpush2.msra.mxu0 0.0
    %1615 = vmatprep.mubr.f32.mxu0 0.0
    %1616 = vmatmul.mubr.f32.gmra.mxu0 %v1549
    %v1617 = vpop.f32.mrf.mxu0
    %v1618 = vadd.f32 0.0, %v1617
    %v1619 = vpop.f32.mrf.mxu0
    %1620 = vdwg.mxu0
    %1622 = vrot.lane.b32.xlu0 %v1537, 32
    %v1623 = vpop.permute.xlu0 %1622
    %v1624 = vsel %vm56, %v1623, 0
    %1626 = vmatprep.subr.mxu0 0.0
    %1627 = vmatpush1.msra.mxu0 0.0
    %1628 = vmatprep.subr.mxu0 0.0
    %1629 = vmatpush1.msra.mxu0 0.0
    %1630 = vmatprep.subr.mxu0 0.0
    %1631 = vmatpush1.msra.mxu0 0.0
    %1632 = vmatprep.subr.mxu0 0.0
    %1633 = vmatpush1.msra.mxu0 0.0
    %1634 = vmatprep.subr.mxu0 0.0
    %1635 = vmatpush1.msra.mxu0 0.0
    %1636 = vmatprep.subr.mxu0 0.0
    %1637 = vmatpush1.msra.mxu0 0.0
    %1638 = vmatprep.subr.mxu0 0.0
    %1639 = vmatpush1.msra.mxu0 0.0
    %1640 = vmatprep.subr.mxu0 0.0
    %1641 = vmatpush1.msra.mxu0 0.0
    %1642 = vmatprep.subr.mxu0 0.0
    %1643 = vmatpush1.msra.mxu0 0.0
    %1644 = vmatprep.subr.mxu0 0.0
    %1645 = vmatpush1.msra.mxu0 0.0
    %1646 = vmatprep.subr.mxu0 0.0
    %1647 = vmatpush1.msra.mxu0 0.0
    %1648 = vmatprep.subr.mxu0 0.0
    %1649 = vmatpush1.msra.mxu0 0.0
    %1650 = vmatprep.subr.mxu0 0.0
    %1651 = vmatpush1.msra.mxu0 %v1541
    %1652 = vmatprep.subr.mxu0 0.0
    %1653 = vmatpush1.msra.mxu0 %v1540
    %1654 = vmatprep.subr.mxu0 0.0
    %1655 = vmatpush1.msra.mxu0 %v1539
    %1656 = vmatprep.subr.mxu0 0.0
    %1657 = vmatpush1.msra.mxu0 %v1538
    %1658 = vmatprep.subr.mxu0 0.0
    %1659 = vmatpush2.msra.mxu0 0.0
    %1660 = vmatprep.subr.mxu0 0.0
    %1661 = vmatpush2.msra.mxu0 0.0
    %1662 = vmatprep.subr.mxu0 0.0
    %1663 = vmatpush2.msra.mxu0 0.0
    %1664 = vmatprep.subr.mxu0 0.0
    %1665 = vmatpush2.msra.mxu0 0.0
    %1666 = vmatprep.subr.mxu0 0.0
    %1667 = vmatpush2.msra.mxu0 0.0
    %1668 = vmatprep.subr.mxu0 0.0
    %1669 = vmatpush2.msra.mxu0 0.0
    %1670 = vmatprep.subr.mxu0 0.0
    %1671 = vmatpush2.msra.mxu0 0.0
    %1672 = vmatprep.subr.mxu0 0.0
    %1673 = vmatpush2.msra.mxu0 0.0
    %1674 = vmatprep.subr.mxu0 0.0
    %1675 = vmatpush2.msra.mxu0 0.0
    %1676 = vmatprep.subr.mxu0 0.0
    %1677 = vmatpush2.msra.mxu0 0.0
    %1678 = vmatprep.subr.mxu0 0.0
    %1679 = vmatpush2.msra.mxu0 0.0
    %1680 = vmatprep.subr.mxu0 0.0
    %1681 = vmatpush2.msra.mxu0 0.0
    %1682 = vmatprep.subr.mxu0 0.0
    %1683 = vmatpush2.msra.mxu0 0.0
    %1684 = vmatprep.subr.mxu0 0.0
    %1685 = vmatpush2.msra.mxu0 0.0
    %1686 = vmatprep.subr.mxu0 0.0
    %1687 = vmatpush2.msra.mxu0 0.0
    %1688 = vmatprep.subr.mxu0 0.0
    %1689 = vmatpush2.msra.mxu0 0.0
    %1690 = vmatprep.mubr.f32.mxu0 0.0
    %1691 = vmatmul.mubr.f32.gmra.mxu0 %v1624
    %v1692 = vpop.f32.mrf.mxu0
    %v1693 = vadd.f32 %v1618, %v1692
    %v1694 = vpop.f32.mrf.mxu0
    %1695 = vdwg.mxu0
    %v1696 = vld [vmem:[%s9] sm:$0x1]
    %v1698 = vlaneseq
    %v1699 = vshrl.u32 %v1698, 7
    %v1700 = vsub.s32 0, %v1699
    %v1701 = vrot.slane %v1696, %v1700
    %v1703 = vadd.f32 %v1693, %v1701
    %1704 = vst [vmem:[#allocation2] sm:$0x3] %v1703
    %vm1706 = vcmask 254976
    %1707 = vst.msk [vmem:[#allocation4] sm:$0x3] %vm1706, %v1623
    // Predicated region
    $region42: #{multimodal_lstm_forward.1} parent=1 // pred_check
      _
    $region43: #{multimodal_lstm_forward.1} parent=1 // pred_check_branch
      %1709 = sbr.rel (0) target = $region45
    $region44: #{multimodal_lstm_forward.1} parent=1 // pred_region
      %s1711 = ssub.s32 32, 32
      %1712 = vsyncadd [#allocation3], %s1711
      %s1714 = sshll.u32 [#allocation2], 4
      %s1715 = int_to_ptr.vmem [resolvable:$true] %s1714
      %1717 = dma.vmem_to_hbm [thread:$0]  %s1715, 32, %s10, [#allocation3]
    $region45: #{multimodal_lstm_forward.1} parent=1 // pred_fallthru
      _
    // Predicated region
    $region46: #{multimodal_lstm_forward.1} parent=1 // pred_check
      _
    $region47: #{multimodal_lstm_forward.1} parent=1 // pred_check_branch
      %1719 = sbr.rel (0) target = $region49
    $region48: #{multimodal_lstm_forward.1} parent=1 // pred_region
      %s1721 = ssub.s32 32, 32
      %1722 = vsyncadd [#allocation5], %s1721
      %s1724 = sshll.u32 [#allocation4], 4
      %s1725 = int_to_ptr.vmem [resolvable:$true] %s1724
      %1727 = dma.vmem_to_hbm [thread:$0]  %s1725, 32, %s11, [#allocation5]
    $region49: #{multimodal_lstm_forward.1} parent=1 // pred_fallthru
      _
    // Predicated region
    $region50: #{multimodal_lstm_forward.1} parent=1 // pred_check
      _
    $region51: #{multimodal_lstm_forward.1} parent=1 // pred_check_branch
      %1729 = sbr.rel (0) target = $region53
    $region52: #{multimodal_lstm_forward.1} parent=1 // pred_region
      %1730 = dma.done [#allocation3], 32
    $region53: #{multimodal_lstm_forward.1} parent=1 // pred_fallthru
      _
    // Predicated region
    $region54: #{multimodal_lstm_forward.1} parent=1 // pred_check
      _
    $region55: #{multimodal_lstm_forward.1} parent=1 // pred_check_branch
      %1732 = sbr.rel (0) target = $region57
    $region56: #{multimodal_lstm_forward.1} parent=1 // pred_region
      %1733 = dma.done [#allocation5], 32
    $region57: #{multimodal_lstm_forward.1} parent=1 // pred_fallthru
      _
    %1734 = vsyncpa [#allocation3], 1
    %1735 = vsyncpa [#allocation5], 1

</llo_original>
